<compile_context>
chip_gen: v5e
topology: v5e:2x2
jax: 0.10.0
libtpu: 0.0.40
codegen_flags: <defaults>
</compile_context>

<pallas_src>
import functools

import jax
import jax.numpy as jnp
from jax import lax
from jax.experimental import pallas as pl
from jax.experimental.pallas import tpu as pltpu

KSIZE = 7
PAD = 3  # padding = 3 for kernel_size = 7 (PyTorch module semantics)


def _spatial_attention_kernel(x_ref, w_ref, o_ref, *, H, W):
    # x_ref : (NB, C, H*W)  VMEM  -- NB batch images, spatial flattened on lanes
    # w_ref : (2*7*7,)      SMEM  -- conv1 weight, flattened OIHW (O = 1)
    # o_ref : (NB, H*W)     VMEM  -- sigmoid attention map, lane-dense store
    nb, C, hw = x_ref.shape
    x = x_ref[...].astype(jnp.float32)            # (NB, C, HW)

    # Channel-wise reductions (dim=1 in PyTorch NCHW), fully lane-dense.
    avg_out = jnp.sum(x, axis=1) * (1.0 / C)      # (NB, HW)
    max_out = jnp.max(x, axis=1)                  # (NB, HW)

    # Row / column index of every flattened spatial position.
    pos = lax.broadcasted_iota(jnp.int32, (nb, hw), 1)
    if (W & (W - 1)) == 0:                        # power-of-two fast path
        col = jnp.bitwise_and(pos, W - 1)
        row = jnp.right_shift(pos, W.bit_length() - 1)
    else:
        col = lax.rem(pos, W)
        row = lax.div(pos, W)

    def bounds_mask(idx, d, extent):
        # float32 mask for 0 <= idx + d < extent ; None == all-valid (d == 0).
        if d == 0:
            return None
        if d > 0:
            m = idx <= (extent - 1 - d)
        else:
            m = idx >= -d
        return m.astype(jnp.float32)

    # 7 row masks + 7 col masks, shared by both input channels (replaces the
    # 49 per-tap boolean masks + 98 selects of the tap-by-tap formulation).
    row_f = [bounds_mask(row, kh - PAD, H) for kh in range(KSIZE)]
    col_f = [bounds_mask(col, kw - PAD, W) for kw in range(KSIZE)]

    def shift(plane, s):
        # shifted[p] = plane[p + s] ; wrapped lanes are killed by the masks.
        if s == 0:
            return plane
        return pltpu.roll(plane, (-s) % hw, axis=1)

    # Stage 1: row-shifted, row-masked planes for both channels.  Shared by
    # all 7 column taps -> 7 rolls per channel instead of 49.
    q = []                                        # q[c][kh] : (NB, HW)
    for plane in (avg_out, max_out):
        per_c = []
        for kh in range(KSIZE):
            dh = kh - PAD
            shifted = shift(plane, dh * W)
            if row_f[kh] is not None:
                shifted = shifted * row_f[kh]
            per_c.append(shifted)
        q.append(per_c)

    # Stage 2+3: for each column offset, a weighted sum over rows and both
    # channels (vector-scalar FMAs off SMEM weights, pure VPU), then a single
    # lane roll by dw and the column-validity mask.
    acc = None
    for kw in range(KSIZE):
        dw = kw - PAD
        t = None
        for c in range(2):
            for kh in range(KSIZE):
                wv = w_ref[c * KSIZE * KSIZE + kh * KSIZE + kw]   # SMEM scalar
                term = q[c][kh] * wv
                t = term if t is None else t + term
        t = shift(t, dw)
        if col_f[kw] is not None:
            t = t * col_f[kw]
        acc = t if acc is None else acc + t

    o_ref[...] = jax.nn.sigmoid(acc).astype(o_ref.dtype)


def _pick_batch_block(N):
    if N <= 8:
        return N
    for d in (8, 7, 6, 5, 4, 3, 2):
        if N % d == 0:
            return d
    return 1


def spatial_attention(x, weight):
    """x: (N, C, H, W); weight: (1, 2, 7, 7) no-bias conv -> (N, 1, H, W)."""
    N, C, H, W = x.shape
    HW = H * W
    NB = _pick_batch_block(N)

    x_flat = x.reshape(N, C, HW)                       # free XLA reshape
    w_flat = weight.reshape(-1).astype(jnp.float32)    # (2*7*7,) = (98,)

    kernel = functools.partial(_spatial_attention_kernel, H=H, W=W)
    out_flat = pl.pallas_call(
        kernel,
        out_shape=jax.ShapeDtypeStruct((N, HW), x.dtype),
        grid=(N // NB,),
        in_specs=[
            pl.BlockSpec((NB, C, HW), lambda b: (b, 0, 0)),
            pl.BlockSpec(memory_space=pltpu.MemorySpace.SMEM),  # weights -> scalars
        ],
        out_specs=pl.BlockSpec((NB, HW), lambda b: (b, 0)),
        compiler_params=pltpu.CompilerParams(
            dimension_semantics=("parallel",)),        # 2 TCs on v7x
    )(x_flat, w_flat)
    return out_flat.reshape(N, 1, H, W)                # free XLA reshape


def _reference(x, weight):
    """Pure-JAX reference matching torch SpatialAttention.forward."""
    avg_out = jnp.mean(x, axis=1, keepdims=True)
    max_out = jnp.max(x, axis=1, keepdims=True)
    inp = jnp.concatenate([avg_out, max_out], axis=1)
    out = lax.conv_general_dilated(
        inp, weight, window_strides=(1, 1),
        padding=((PAD, PAD), (PAD, PAD)),
        dimension_numbers=("NCHW", "OIHW", "NCHW"),
        precision=lax.Precision.HIGHEST)
    return jax.nn.sigmoid(out)


if __name__ == "__main__":
    key = jax.random.PRNGKey(0)
    kx, kw = jax.random.split(key)

    # Small shapes consistent with the module: batch=2, channels=4, spatial=16.
    x = jax.random.normal(kx, (2, 4, 16, 16), dtype=jnp.float32)
    weight = jax.random.normal(kw, (1, 2, KSIZE, KSIZE), dtype=jnp.float32) * 0.143

    out = spatial_attention(x, weight)
    out = jax.block_until_ready(out)

    ref = _reference(x, weight)
    assert out.shape == (2, 1, 16, 16)
    assert jnp.allclose(out, ref, atol=1e-4, rtol=1e-4), "mismatch vs reference"

    print("KERNEL_OK")
</pallas_src>

<mosaic_0001>
module attributes {stable_mosaic.version = 11 : i64} {
  func.func @_spatial_attention_kernel(%arg0: i32, %arg1: memref<2x4x256xf32, #tpu.memory_space<vmem>>, %arg2: memref<98xf32, #tpu.memory_space<smem>>, %arg3: memref<2x256xf32, #tpu.memory_space<vmem>>) attributes {dimension_semantics = [#tpu.dimension_semantics<parallel>], iteration_bounds = array<i64: 1>, scalar_prefetch = 0 : i64, scratch_operands = 0 : i64, tpu.core_type = #tpu.core_type<tc>, window_params = [{transform_indices = @transform_0, window_bounds = array<i64: 2, 4, 256>}, {transform_indices = @transform_1, window_bounds = array<i64: 98>}, {transform_indices = @transform_2, window_bounds = array<i64: 2, 256>}]} {
    %c0 = arith.constant 0 : index
    %c0_0 = arith.constant 0 : index
    %c0_1 = arith.constant 0 : index
    %0 = vector.load %arg1[%c0, %c0_0, %c0_1] : memref<2x4x256xf32, #tpu.memory_space<vmem>>, vector<2x4x256xf32>
    %cst = arith.constant dense<0.000000e+00> : vector<2x256xf32>
    %1 = vector.multi_reduction <add>, %0, %cst [1] : vector<2x4x256xf32> to vector<2x256xf32>
    %cst_2 = arith.constant 2.500000e-01 : f32
    %2 = vector.broadcast %cst_2 : f32 to vector<2x256xf32>
    %3 = arith.mulf %1, %2 : vector<2x256xf32>
    %cst_3 = arith.constant dense<0xFF800000> : vector<2x256xf32>
    %4 = vector.multi_reduction <maximumf>, %0, %cst_3 [1] : vector<2x4x256xf32> to vector<2x256xf32>
    %5 = tpu.iota {dimensions = array<i32: 1>} : vector<2x256xi32>
    %c15_i32 = arith.constant 15 : i32
    %6 = vector.broadcast %c15_i32 : i32 to vector<2x256xi32>
    %7 = arith.andi %5, %6 : vector<2x256xi32>
    %c4_i32 = arith.constant 4 : i32
    %8 = vector.broadcast %c4_i32 : i32 to vector<2x256xi32>
    %9 = arith.shrsi %5, %8 : vector<2x256xi32>
    %c3_i32 = arith.constant 3 : i32
    %10 = vector.broadcast %c3_i32 : i32 to vector<2x256xi32>
    %11 = arith.cmpi sge, %9, %10 : vector<2x256xi32>
    %12 = arith.extui %11 : vector<2x256xi1> to vector<2x256xi32>
    %13 = arith.sitofp %12 : vector<2x256xi32> to vector<2x256xf32>
    %c2_i32 = arith.constant 2 : i32
    %14 = vector.broadcast %c2_i32 : i32 to vector<2x256xi32>
    %15 = arith.cmpi sge, %9, %14 : vector<2x256xi32>
    %16 = arith.extui %15 : vector<2x256xi1> to vector<2x256xi32>
    %17 = arith.sitofp %16 : vector<2x256xi32> to vector<2x256xf32>
    %c1_i32 = arith.constant 1 : i32
    %18 = vector.broadcast %c1_i32 : i32 to vector<2x256xi32>
    %19 = arith.cmpi sge, %9, %18 : vector<2x256xi32>
    %20 = arith.extui %19 : vector<2x256xi1> to vector<2x256xi32>
    %21 = arith.sitofp %20 : vector<2x256xi32> to vector<2x256xf32>
    %c14_i32 = arith.constant 14 : i32
    %22 = vector.broadcast %c14_i32 : i32 to vector<2x256xi32>
    %23 = arith.cmpi sle, %9, %22 : vector<2x256xi32>
    %24 = arith.extui %23 : vector<2x256xi1> to vector<2x256xi32>
    %25 = arith.sitofp %24 : vector<2x256xi32> to vector<2x256xf32>
    %c13_i32 = arith.constant 13 : i32
    %26 = vector.broadcast %c13_i32 : i32 to vector<2x256xi32>
    %27 = arith.cmpi sle, %9, %26 : vector<2x256xi32>
    %28 = arith.extui %27 : vector<2x256xi1> to vector<2x256xi32>
    %29 = arith.sitofp %28 : vector<2x256xi32> to vector<2x256xf32>
    %c12_i32 = arith.constant 12 : i32
    %30 = vector.broadcast %c12_i32 : i32 to vector<2x256xi32>
    %31 = arith.cmpi sle, %9, %30 : vector<2x256xi32>
    %32 = arith.extui %31 : vector<2x256xi1> to vector<2x256xi32>
    %33 = arith.sitofp %32 : vector<2x256xi32> to vector<2x256xf32>
    %c3_i32_4 = arith.constant 3 : i32
    %34 = vector.broadcast %c3_i32_4 : i32 to vector<2x256xi32>
    %35 = arith.cmpi sge, %7, %34 : vector<2x256xi32>
    %36 = arith.extui %35 : vector<2x256xi1> to vector<2x256xi32>
    %37 = arith.sitofp %36 : vector<2x256xi32> to vector<2x256xf32>
    %c2_i32_5 = arith.constant 2 : i32
    %38 = vector.broadcast %c2_i32_5 : i32 to vector<2x256xi32>
    %39 = arith.cmpi sge, %7, %38 : vector<2x256xi32>
    %40 = arith.extui %39 : vector<2x256xi1> to vector<2x256xi32>
    %41 = arith.sitofp %40 : vector<2x256xi32> to vector<2x256xf32>
    %c1_i32_6 = arith.constant 1 : i32
    %42 = vector.broadcast %c1_i32_6 : i32 to vector<2x256xi32>
    %43 = arith.cmpi sge, %7, %42 : vector<2x256xi32>
    %44 = arith.extui %43 : vector<2x256xi1> to vector<2x256xi32>
    %45 = arith.sitofp %44 : vector<2x256xi32> to vector<2x256xf32>
    %c14_i32_7 = arith.constant 14 : i32
    %46 = vector.broadcast %c14_i32_7 : i32 to vector<2x256xi32>
    %47 = arith.cmpi sle, %7, %46 : vector<2x256xi32>
    %48 = arith.extui %47 : vector<2x256xi1> to vector<2x256xi32>
    %49 = arith.sitofp %48 : vector<2x256xi32> to vector<2x256xf32>
    %c13_i32_8 = arith.constant 13 : i32
    %50 = vector.broadcast %c13_i32_8 : i32 to vector<2x256xi32>
    %51 = arith.cmpi sle, %7, %50 : vector<2x256xi32>
    %52 = arith.extui %51 : vector<2x256xi1> to vector<2x256xi32>
    %53 = arith.sitofp %52 : vector<2x256xi32> to vector<2x256xf32>
    %c12_i32_9 = arith.constant 12 : i32
    %54 = vector.broadcast %c12_i32_9 : i32 to vector<2x256xi32>
    %55 = arith.cmpi sle, %7, %54 : vector<2x256xi32>
    %56 = arith.extui %55 : vector<2x256xi1> to vector<2x256xi32>
    %57 = arith.sitofp %56 : vector<2x256xi32> to vector<2x256xf32>
    %c48_i32 = arith.constant 48 : i32
    %58 = tpu.dynamic_rotate %3 by %c48_i32 dim 1 : vector<2x256xf32>, i32 -> vector<2x256xf32>
    %59 = arith.mulf %58, %13 : vector<2x256xf32>
    %c32_i32 = arith.constant 32 : i32
    %60 = tpu.dynamic_rotate %3 by %c32_i32 dim 1 : vector<2x256xf32>, i32 -> vector<2x256xf32>
    %61 = arith.mulf %60, %17 : vector<2x256xf32>
    %c16_i32 = arith.constant 16 : i32
    %62 = tpu.dynamic_rotate %3 by %c16_i32 dim 1 : vector<2x256xf32>, i32 -> vector<2x256xf32>
    %63 = arith.mulf %62, %21 : vector<2x256xf32>
    %c240_i32 = arith.constant 240 : i32
    %64 = tpu.dynamic_rotate %3 by %c240_i32 dim 1 : vector<2x256xf32>, i32 -> vector<2x256xf32>
    %65 = arith.mulf %64, %25 : vector<2x256xf32>
    %c224_i32 = arith.constant 224 : i32
    %66 = tpu.dynamic_rotate %3 by %c224_i32 dim 1 : vector<2x256xf32>, i32 -> vector<2x256xf32>
    %67 = arith.mulf %66, %29 : vector<2x256xf32>
    %c208_i32 = arith.constant 208 : i32
    %68 = tpu.dynamic_rotate %3 by %c208_i32 dim 1 : vector<2x256xf32>, i32 -> vector<2x256xf32>
    %69 = arith.mulf %68, %33 : vector<2x256xf32>
    %c48_i32_10 = arith.constant 48 : i32
    %70 = tpu.dynamic_rotate %4 by %c48_i32_10 dim 1 : vector<2x256xf32>, i32 -> vector<2x256xf32>
    %71 = arith.mulf %70, %13 : vector<2x256xf32>
    %c32_i32_11 = arith.constant 32 : i32
    %72 = tpu.dynamic_rotate %4 by %c32_i32_11 dim 1 : vector<2x256xf32>, i32 -> vector<2x256xf32>
    %73 = arith.mulf %72, %17 : vector<2x256xf32>
    %c16_i32_12 = arith.constant 16 : i32
    %74 = tpu.dynamic_rotate %4 by %c16_i32_12 dim 1 : vector<2x256xf32>, i32 -> vector<2x256xf32>
    %75 = arith.mulf %74, %21 : vector<2x256xf32>
    %c240_i32_13 = arith.constant 240 : i32
    %76 = tpu.dynamic_rotate %4 by %c240_i32_13 dim 1 : vector<2x256xf32>, i32 -> vector<2x256xf32>
    %77 = arith.mulf %76, %25 : vector<2x256xf32>
    %c224_i32_14 = arith.constant 224 : i32
    %78 = tpu.dynamic_rotate %4 by %c224_i32_14 dim 1 : vector<2x256xf32>, i32 -> vector<2x256xf32>
    %79 = arith.mulf %78, %29 : vector<2x256xf32>
    %c208_i32_15 = arith.constant 208 : i32
    %80 = tpu.dynamic_rotate %4 by %c208_i32_15 dim 1 : vector<2x256xf32>, i32 -> vector<2x256xf32>
    %81 = arith.mulf %80, %33 : vector<2x256xf32>
    %c0_16 = arith.constant 0 : index
    %82 = memref.load %arg2[%c0_16] : memref<98xf32, #tpu.memory_space<smem>>
    %83 = vector.broadcast %82 : f32 to vector<2x256xf32>
    %84 = arith.mulf %59, %83 : vector<2x256xf32>
    %c7 = arith.constant 7 : index
    %85 = memref.load %arg2[%c7] : memref<98xf32, #tpu.memory_space<smem>>
    %86 = vector.broadcast %85 : f32 to vector<2x256xf32>
    %87 = arith.mulf %61, %86 : vector<2x256xf32>
    %88 = arith.addf %84, %87 : vector<2x256xf32>
    %c14 = arith.constant 14 : index
    %89 = memref.load %arg2[%c14] : memref<98xf32, #tpu.memory_space<smem>>
    %90 = vector.broadcast %89 : f32 to vector<2x256xf32>
    %91 = arith.mulf %63, %90 : vector<2x256xf32>
    %92 = arith.addf %88, %91 : vector<2x256xf32>
    %c21 = arith.constant 21 : index
    %93 = memref.load %arg2[%c21] : memref<98xf32, #tpu.memory_space<smem>>
    %94 = vector.broadcast %93 : f32 to vector<2x256xf32>
    %95 = arith.mulf %3, %94 : vector<2x256xf32>
    %96 = arith.addf %92, %95 : vector<2x256xf32>
    %c28 = arith.constant 28 : index
    %97 = memref.load %arg2[%c28] : memref<98xf32, #tpu.memory_space<smem>>
    %98 = vector.broadcast %97 : f32 to vector<2x256xf32>
    %99 = arith.mulf %65, %98 : vector<2x256xf32>
    %100 = arith.addf %96, %99 : vector<2x256xf32>
    %c35 = arith.constant 35 : index
    %101 = memref.load %arg2[%c35] : memref<98xf32, #tpu.memory_space<smem>>
    %102 = vector.broadcast %101 : f32 to vector<2x256xf32>
    %103 = arith.mulf %67, %102 : vector<2x256xf32>
    %104 = arith.addf %100, %103 : vector<2x256xf32>
    %c42 = arith.constant 42 : index
    %105 = memref.load %arg2[%c42] : memref<98xf32, #tpu.memory_space<smem>>
    %106 = vector.broadcast %105 : f32 to vector<2x256xf32>
    %107 = arith.mulf %69, %106 : vector<2x256xf32>
    %108 = arith.addf %104, %107 : vector<2x256xf32>
    %c49 = arith.constant 49 : index
    %109 = memref.load %arg2[%c49] : memref<98xf32, #tpu.memory_space<smem>>
    %110 = vector.broadcast %109 : f32 to vector<2x256xf32>
    %111 = arith.mulf %71, %110 : vector<2x256xf32>
    %112 = arith.addf %108, %111 : vector<2x256xf32>
    %c56 = arith.constant 56 : index
    %113 = memref.load %arg2[%c56] : memref<98xf32, #tpu.memory_space<smem>>
    %114 = vector.broadcast %113 : f32 to vector<2x256xf32>
    %115 = arith.mulf %73, %114 : vector<2x256xf32>
    %116 = arith.addf %112, %115 : vector<2x256xf32>
    %c63 = arith.constant 63 : index
    %117 = memref.load %arg2[%c63] : memref<98xf32, #tpu.memory_space<smem>>
    %118 = vector.broadcast %117 : f32 to vector<2x256xf32>
    %119 = arith.mulf %75, %118 : vector<2x256xf32>
    %120 = arith.addf %116, %119 : vector<2x256xf32>
    %c70 = arith.constant 70 : index
    %121 = memref.load %arg2[%c70] : memref<98xf32, #tpu.memory_space<smem>>
    %122 = vector.broadcast %121 : f32 to vector<2x256xf32>
    %123 = arith.mulf %4, %122 : vector<2x256xf32>
    %124 = arith.addf %120, %123 : vector<2x256xf32>
    %c77 = arith.constant 77 : index
    %125 = memref.load %arg2[%c77] : memref<98xf32, #tpu.memory_space<smem>>
    %126 = vector.broadcast %125 : f32 to vector<2x256xf32>
    %127 = arith.mulf %77, %126 : vector<2x256xf32>
    %128 = arith.addf %124, %127 : vector<2x256xf32>
    %c84 = arith.constant 84 : index
    %129 = memref.load %arg2[%c84] : memref<98xf32, #tpu.memory_space<smem>>
    %130 = vector.broadcast %129 : f32 to vector<2x256xf32>
    %131 = arith.mulf %79, %130 : vector<2x256xf32>
    %132 = arith.addf %128, %131 : vector<2x256xf32>
    %c91 = arith.constant 91 : index
    %133 = memref.load %arg2[%c91] : memref<98xf32, #tpu.memory_space<smem>>
    %134 = vector.broadcast %133 : f32 to vector<2x256xf32>
    %135 = arith.mulf %81, %134 : vector<2x256xf32>
    %136 = arith.addf %132, %135 : vector<2x256xf32>
    %c3_i32_17 = arith.constant 3 : i32
    %137 = tpu.dynamic_rotate %136 by %c3_i32_17 dim 1 : vector<2x256xf32>, i32 -> vector<2x256xf32>
    %138 = arith.mulf %137, %37 : vector<2x256xf32>
    %c1 = arith.constant 1 : index
    %139 = memref.load %arg2[%c1] : memref<98xf32, #tpu.memory_space<smem>>
    %140 = vector.broadcast %139 : f32 to vector<2x256xf32>
    %141 = arith.mulf %59, %140 : vector<2x256xf32>
    %c8 = arith.constant 8 : index
    %142 = memref.load %arg2[%c8] : memref<98xf32, #tpu.memory_space<smem>>
    %143 = vector.broadcast %142 : f32 to vector<2x256xf32>
    %144 = arith.mulf %61, %143 : vector<2x256xf32>
    %145 = arith.addf %141, %144 : vector<2x256xf32>
    %c15 = arith.constant 15 : index
    %146 = memref.load %arg2[%c15] : memref<98xf32, #tpu.memory_space<smem>>
    %147 = vector.broadcast %146 : f32 to vector<2x256xf32>
    %148 = arith.mulf %63, %147 : vector<2x256xf32>
    %149 = arith.addf %145, %148 : vector<2x256xf32>
    %c22 = arith.constant 22 : index
    %150 = memref.load %arg2[%c22] : memref<98xf32, #tpu.memory_space<smem>>
    %151 = vector.broadcast %150 : f32 to vector<2x256xf32>
    %152 = arith.mulf %3, %151 : vector<2x256xf32>
    %153 = arith.addf %149, %152 : vector<2x256xf32>
    %c29 = arith.constant 29 : index
    %154 = memref.load %arg2[%c29] : memref<98xf32, #tpu.memory_space<smem>>
    %155 = vector.broadcast %154 : f32 to vector<2x256xf32>
    %156 = arith.mulf %65, %155 : vector<2x256xf32>
    %157 = arith.addf %153, %156 : vector<2x256xf32>
    %c36 = arith.constant 36 : index
    %158 = memref.load %arg2[%c36] : memref<98xf32, #tpu.memory_space<smem>>
    %159 = vector.broadcast %158 : f32 to vector<2x256xf32>
    %160 = arith.mulf %67, %159 : vector<2x256xf32>
    %161 = arith.addf %157, %160 : vector<2x256xf32>
    %c43 = arith.constant 43 : index
    %162 = memref.load %arg2[%c43] : memref<98xf32, #tpu.memory_space<smem>>
    %163 = vector.broadcast %162 : f32 to vector<2x256xf32>
    %164 = arith.mulf %69, %163 : vector<2x256xf32>
    %165 = arith.addf %161, %164 : vector<2x256xf32>
    %c50 = arith.constant 50 : index
    %166 = memref.load %arg2[%c50] : memref<98xf32, #tpu.memory_space<smem>>
    %167 = vector.broadcast %166 : f32 to vector<2x256xf32>
    %168 = arith.mulf %71, %167 : vector<2x256xf32>
    %169 = arith.addf %165, %168 : vector<2x256xf32>
    %c57 = arith.constant 57 : index
    %170 = memref.load %arg2[%c57] : memref<98xf32, #tpu.memory_space<smem>>
    %171 = vector.broadcast %170 : f32 to vector<2x256xf32>
    %172 = arith.mulf %73, %171 : vector<2x256xf32>
    %173 = arith.addf %169, %172 : vector<2x256xf32>
    %c64 = arith.constant 64 : index
    %174 = memref.load %arg2[%c64] : memref<98xf32, #tpu.memory_space<smem>>
    %175 = vector.broadcast %174 : f32 to vector<2x256xf32>
    %176 = arith.mulf %75, %175 : vector<2x256xf32>
    %177 = arith.addf %173, %176 : vector<2x256xf32>
    %c71 = arith.constant 71 : index
    %178 = memref.load %arg2[%c71] : memref<98xf32, #tpu.memory_space<smem>>
    %179 = vector.broadcast %178 : f32 to vector<2x256xf32>
    %180 = arith.mulf %4, %179 : vector<2x256xf32>
    %181 = arith.addf %177, %180 : vector<2x256xf32>
    %c78 = arith.constant 78 : index
    %182 = memref.load %arg2[%c78] : memref<98xf32, #tpu.memory_space<smem>>
    %183 = vector.broadcast %182 : f32 to vector<2x256xf32>
    %184 = arith.mulf %77, %183 : vector<2x256xf32>
    %185 = arith.addf %181, %184 : vector<2x256xf32>
    %c85 = arith.constant 85 : index
    %186 = memref.load %arg2[%c85] : memref<98xf32, #tpu.memory_space<smem>>
    %187 = vector.broadcast %186 : f32 to vector<2x256xf32>
    %188 = arith.mulf %79, %187 : vector<2x256xf32>
    %189 = arith.addf %185, %188 : vector<2x256xf32>
    %c92 = arith.constant 92 : index
    %190 = memref.load %arg2[%c92] : memref<98xf32, #tpu.memory_space<smem>>
    %191 = vector.broadcast %190 : f32 to vector<2x256xf32>
    %192 = arith.mulf %81, %191 : vector<2x256xf32>
    %193 = arith.addf %189, %192 : vector<2x256xf32>
    %c2_i32_18 = arith.constant 2 : i32
    %194 = tpu.dynamic_rotate %193 by %c2_i32_18 dim 1 : vector<2x256xf32>, i32 -> vector<2x256xf32>
    %195 = arith.mulf %194, %41 : vector<2x256xf32>
    %196 = arith.addf %138, %195 : vector<2x256xf32>
    %c2 = arith.constant 2 : index
    %197 = memref.load %arg2[%c2] : memref<98xf32, #tpu.memory_space<smem>>
    %198 = vector.broadcast %197 : f32 to vector<2x256xf32>
    %199 = arith.mulf %59, %198 : vector<2x256xf32>
    %c9 = arith.constant 9 : index
    %200 = memref.load %arg2[%c9] : memref<98xf32, #tpu.memory_space<smem>>
    %201 = vector.broadcast %200 : f32 to vector<2x256xf32>
    %202 = arith.mulf %61, %201 : vector<2x256xf32>
    %203 = arith.addf %199, %202 : vector<2x256xf32>
    %c16 = arith.constant 16 : index
    %204 = memref.load %arg2[%c16] : memref<98xf32, #tpu.memory_space<smem>>
    %205 = vector.broadcast %204 : f32 to vector<2x256xf32>
    %206 = arith.mulf %63, %205 : vector<2x256xf32>
    %207 = arith.addf %203, %206 : vector<2x256xf32>
    %c23 = arith.constant 23 : index
    %208 = memref.load %arg2[%c23] : memref<98xf32, #tpu.memory_space<smem>>
    %209 = vector.broadcast %208 : f32 to vector<2x256xf32>
    %210 = arith.mulf %3, %209 : vector<2x256xf32>
    %211 = arith.addf %207, %210 : vector<2x256xf32>
    %c30 = arith.constant 30 : index
    %212 = memref.load %arg2[%c30] : memref<98xf32, #tpu.memory_space<smem>>
    %213 = vector.broadcast %212 : f32 to vector<2x256xf32>
    %214 = arith.mulf %65, %213 : vector<2x256xf32>
    %215 = arith.addf %211, %214 : vector<2x256xf32>
    %c37 = arith.constant 37 : index
    %216 = memref.load %arg2[%c37] : memref<98xf32, #tpu.memory_space<smem>>
    %217 = vector.broadcast %216 : f32 to vector<2x256xf32>
    %218 = arith.mulf %67, %217 : vector<2x256xf32>
    %219 = arith.addf %215, %218 : vector<2x256xf32>
    %c44 = arith.constant 44 : index
    %220 = memref.load %arg2[%c44] : memref<98xf32, #tpu.memory_space<smem>>
    %221 = vector.broadcast %220 : f32 to vector<2x256xf32>
    %222 = arith.mulf %69, %221 : vector<2x256xf32>
    %223 = arith.addf %219, %222 : vector<2x256xf32>
    %c51 = arith.constant 51 : index
    %224 = memref.load %arg2[%c51] : memref<98xf32, #tpu.memory_space<smem>>
    %225 = vector.broadcast %224 : f32 to vector<2x256xf32>
    %226 = arith.mulf %71, %225 : vector<2x256xf32>
    %227 = arith.addf %223, %226 : vector<2x256xf32>
    %c58 = arith.constant 58 : index
    %228 = memref.load %arg2[%c58] : memref<98xf32, #tpu.memory_space<smem>>
    %229 = vector.broadcast %228 : f32 to vector<2x256xf32>
    %230 = arith.mulf %73, %229 : vector<2x256xf32>
    %231 = arith.addf %227, %230 : vector<2x256xf32>
    %c65 = arith.constant 65 : index
    %232 = memref.load %arg2[%c65] : memref<98xf32, #tpu.memory_space<smem>>
    %233 = vector.broadcast %232 : f32 to vector<2x256xf32>
    %234 = arith.mulf %75, %233 : vector<2x256xf32>
    %235 = arith.addf %231, %234 : vector<2x256xf32>
    %c72 = arith.constant 72 : index
    %236 = memref.load %arg2[%c72] : memref<98xf32, #tpu.memory_space<smem>>
    %237 = vector.broadcast %236 : f32 to vector<2x256xf32>
    %238 = arith.mulf %4, %237 : vector<2x256xf32>
    %239 = arith.addf %235, %238 : vector<2x256xf32>
    %c79 = arith.constant 79 : index
    %240 = memref.load %arg2[%c79] : memref<98xf32, #tpu.memory_space<smem>>
    %241 = vector.broadcast %240 : f32 to vector<2x256xf32>
    %242 = arith.mulf %77, %241 : vector<2x256xf32>
    %243 = arith.addf %239, %242 : vector<2x256xf32>
    %c86 = arith.constant 86 : index
    %244 = memref.load %arg2[%c86] : memref<98xf32, #tpu.memory_space<smem>>
    %245 = vector.broadcast %244 : f32 to vector<2x256xf32>
    %246 = arith.mulf %79, %245 : vector<2x256xf32>
    %247 = arith.addf %243, %246 : vector<2x256xf32>
    %c93 = arith.constant 93 : index
    %248 = memref.load %arg2[%c93] : memref<98xf32, #tpu.memory_space<smem>>
    %249 = vector.broadcast %248 : f32 to vector<2x256xf32>
    %250 = arith.mulf %81, %249 : vector<2x256xf32>
    %251 = arith.addf %247, %250 : vector<2x256xf32>
    %c1_i32_19 = arith.constant 1 : i32
    %252 = tpu.dynamic_rotate %251 by %c1_i32_19 dim 1 : vector<2x256xf32>, i32 -> vector<2x256xf32>
    %253 = arith.mulf %252, %45 : vector<2x256xf32>
    %254 = arith.addf %196, %253 : vector<2x256xf32>
    %c3 = arith.constant 3 : index
    %255 = memref.load %arg2[%c3] : memref<98xf32, #tpu.memory_space<smem>>
    %256 = vector.broadcast %255 : f32 to vector<2x256xf32>
    %257 = arith.mulf %59, %256 : vector<2x256xf32>
    %c10 = arith.constant 10 : index
    %258 = memref.load %arg2[%c10] : memref<98xf32, #tpu.memory_space<smem>>
    %259 = vector.broadcast %258 : f32 to vector<2x256xf32>
    %260 = arith.mulf %61, %259 : vector<2x256xf32>
    %261 = arith.addf %257, %260 : vector<2x256xf32>
    %c17 = arith.constant 17 : index
    %262 = memref.load %arg2[%c17] : memref<98xf32, #tpu.memory_space<smem>>
    %263 = vector.broadcast %262 : f32 to vector<2x256xf32>
    %264 = arith.mulf %63, %263 : vector<2x256xf32>
    %265 = arith.addf %261, %264 : vector<2x256xf32>
    %c24 = arith.constant 24 : index
    %266 = memref.load %arg2[%c24] : memref<98xf32, #tpu.memory_space<smem>>
    %267 = vector.broadcast %266 : f32 to vector<2x256xf32>
    %268 = arith.mulf %3, %267 : vector<2x256xf32>
    %269 = arith.addf %265, %268 : vector<2x256xf32>
    %c31 = arith.constant 31 : index
    %270 = memref.load %arg2[%c31] : memref<98xf32, #tpu.memory_space<smem>>
    %271 = vector.broadcast %270 : f32 to vector<2x256xf32>
    %272 = arith.mulf %65, %271 : vector<2x256xf32>
    %273 = arith.addf %269, %272 : vector<2x256xf32>
    %c38 = arith.constant 38 : index
    %274 = memref.load %arg2[%c38] : memref<98xf32, #tpu.memory_space<smem>>
    %275 = vector.broadcast %274 : f32 to vector<2x256xf32>
    %276 = arith.mulf %67, %275 : vector<2x256xf32>
    %277 = arith.addf %273, %276 : vector<2x256xf32>
    %c45 = arith.constant 45 : index
    %278 = memref.load %arg2[%c45] : memref<98xf32, #tpu.memory_space<smem>>
    %279 = vector.broadcast %278 : f32 to vector<2x256xf32>
    %280 = arith.mulf %69, %279 : vector<2x256xf32>
    %281 = arith.addf %277, %280 : vector<2x256xf32>
    %c52 = arith.constant 52 : index
    %282 = memref.load %arg2[%c52] : memref<98xf32, #tpu.memory_space<smem>>
    %283 = vector.broadcast %282 : f32 to vector<2x256xf32>
    %284 = arith.mulf %71, %283 : vector<2x256xf32>
    %285 = arith.addf %281, %284 : vector<2x256xf32>
    %c59 = arith.constant 59 : index
    %286 = memref.load %arg2[%c59] : memref<98xf32, #tpu.memory_space<smem>>
    %287 = vector.broadcast %286 : f32 to vector<2x256xf32>
    %288 = arith.mulf %73, %287 : vector<2x256xf32>
    %289 = arith.addf %285, %288 : vector<2x256xf32>
    %c66 = arith.constant 66 : index
    %290 = memref.load %arg2[%c66] : memref<98xf32, #tpu.memory_space<smem>>
    %291 = vector.broadcast %290 : f32 to vector<2x256xf32>
    %292 = arith.mulf %75, %291 : vector<2x256xf32>
    %293 = arith.addf %289, %292 : vector<2x256xf32>
    %c73 = arith.constant 73 : index
    %294 = memref.load %arg2[%c73] : memref<98xf32, #tpu.memory_space<smem>>
    %295 = vector.broadcast %294 : f32 to vector<2x256xf32>
    %296 = arith.mulf %4, %295 : vector<2x256xf32>
    %297 = arith.addf %293, %296 : vector<2x256xf32>
    %c80 = arith.constant 80 : index
    %298 = memref.load %arg2[%c80] : memref<98xf32, #tpu.memory_space<smem>>
    %299 = vector.broadcast %298 : f32 to vector<2x256xf32>
    %300 = arith.mulf %77, %299 : vector<2x256xf32>
    %301 = arith.addf %297, %300 : vector<2x256xf32>
    %c87 = arith.constant 87 : index
    %302 = memref.load %arg2[%c87] : memref<98xf32, #tpu.memory_space<smem>>
    %303 = vector.broadcast %302 : f32 to vector<2x256xf32>
    %304 = arith.mulf %79, %303 : vector<2x256xf32>
    %305 = arith.addf %301, %304 : vector<2x256xf32>
    %c94 = arith.constant 94 : index
    %306 = memref.load %arg2[%c94] : memref<98xf32, #tpu.memory_space<smem>>
    %307 = vector.broadcast %306 : f32 to vector<2x256xf32>
    %308 = arith.mulf %81, %307 : vector<2x256xf32>
    %309 = arith.addf %305, %308 : vector<2x256xf32>
    %310 = arith.addf %254, %309 : vector<2x256xf32>
    %c4 = arith.constant 4 : index
    %311 = memref.load %arg2[%c4] : memref<98xf32, #tpu.memory_space<smem>>
    %312 = vector.broadcast %311 : f32 to vector<2x256xf32>
    %313 = arith.mulf %59, %312 : vector<2x256xf32>
    %c11 = arith.constant 11 : index
    %314 = memref.load %arg2[%c11] : memref<98xf32, #tpu.memory_space<smem>>
    %315 = vector.broadcast %314 : f32 to vector<2x256xf32>
    %316 = arith.mulf %61, %315 : vector<2x256xf32>
    %317 = arith.addf %313, %316 : vector<2x256xf32>
    %c18 = arith.constant 18 : index
    %318 = memref.load %arg2[%c18] : memref<98xf32, #tpu.memory_space<smem>>
    %319 = vector.broadcast %318 : f32 to vector<2x256xf32>
    %320 = arith.mulf %63, %319 : vector<2x256xf32>
    %321 = arith.addf %317, %320 : vector<2x256xf32>
    %c25 = arith.constant 25 : index
    %322 = memref.load %arg2[%c25] : memref<98xf32, #tpu.memory_space<smem>>
    %323 = vector.broadcast %322 : f32 to vector<2x256xf32>
    %324 = arith.mulf %3, %323 : vector<2x256xf32>
    %325 = arith.addf %321, %324 : vector<2x256xf32>
    %c32 = arith.constant 32 : index
    %326 = memref.load %arg2[%c32] : memref<98xf32, #tpu.memory_space<smem>>
    %327 = vector.broadcast %326 : f32 to vector<2x256xf32>
    %328 = arith.mulf %65, %327 : vector<2x256xf32>
    %329 = arith.addf %325, %328 : vector<2x256xf32>
    %c39 = arith.constant 39 : index
    %330 = memref.load %arg2[%c39] : memref<98xf32, #tpu.memory_space<smem>>
    %331 = vector.broadcast %330 : f32 to vector<2x256xf32>
    %332 = arith.mulf %67, %331 : vector<2x256xf32>
    %333 = arith.addf %329, %332 : vector<2x256xf32>
    %c46 = arith.constant 46 : index
    %334 = memref.load %arg2[%c46] : memref<98xf32, #tpu.memory_space<smem>>
    %335 = vector.broadcast %334 : f32 to vector<2x256xf32>
    %336 = arith.mulf %69, %335 : vector<2x256xf32>
    %337 = arith.addf %333, %336 : vector<2x256xf32>
    %c53 = arith.constant 53 : index
    %338 = memref.load %arg2[%c53] : memref<98xf32, #tpu.memory_space<smem>>
    %339 = vector.broadcast %338 : f32 to vector<2x256xf32>
    %340 = arith.mulf %71, %339 : vector<2x256xf32>
    %341 = arith.addf %337, %340 : vector<2x256xf32>
    %c60 = arith.constant 60 : index
    %342 = memref.load %arg2[%c60] : memref<98xf32, #tpu.memory_space<smem>>
    %343 = vector.broadcast %342 : f32 to vector<2x256xf32>
    %344 = arith.mulf %73, %343 : vector<2x256xf32>
    %345 = arith.addf %341, %344 : vector<2x256xf32>
    %c67 = arith.constant 67 : index
    %346 = memref.load %arg2[%c67] : memref<98xf32, #tpu.memory_space<smem>>
    %347 = vector.broadcast %346 : f32 to vector<2x256xf32>
    %348 = arith.mulf %75, %347 : vector<2x256xf32>
    %349 = arith.addf %345, %348 : vector<2x256xf32>
    %c74 = arith.constant 74 : index
    %350 = memref.load %arg2[%c74] : memref<98xf32, #tpu.memory_space<smem>>
    %351 = vector.broadcast %350 : f32 to vector<2x256xf32>
    %352 = arith.mulf %4, %351 : vector<2x256xf32>
    %353 = arith.addf %349, %352 : vector<2x256xf32>
    %c81 = arith.constant 81 : index
    %354 = memref.load %arg2[%c81] : memref<98xf32, #tpu.memory_space<smem>>
    %355 = vector.broadcast %354 : f32 to vector<2x256xf32>
    %356 = arith.mulf %77, %355 : vector<2x256xf32>
    %357 = arith.addf %353, %356 : vector<2x256xf32>
    %c88 = arith.constant 88 : index
    %358 = memref.load %arg2[%c88] : memref<98xf32, #tpu.memory_space<smem>>
    %359 = vector.broadcast %358 : f32 to vector<2x256xf32>
    %360 = arith.mulf %79, %359 : vector<2x256xf32>
    %361 = arith.addf %357, %360 : vector<2x256xf32>
    %c95 = arith.constant 95 : index
    %362 = memref.load %arg2[%c95] : memref<98xf32, #tpu.memory_space<smem>>
    %363 = vector.broadcast %362 : f32 to vector<2x256xf32>
    %364 = arith.mulf %81, %363 : vector<2x256xf32>
    %365 = arith.addf %361, %364 : vector<2x256xf32>
    %c255_i32 = arith.constant 255 : i32
    %366 = tpu.dynamic_rotate %365 by %c255_i32 dim 1 : vector<2x256xf32>, i32 -> vector<2x256xf32>
    %367 = arith.mulf %366, %49 : vector<2x256xf32>
    %368 = arith.addf %310, %367 : vector<2x256xf32>
    %c5 = arith.constant 5 : index
    %369 = memref.load %arg2[%c5] : memref<98xf32, #tpu.memory_space<smem>>
    %370 = vector.broadcast %369 : f32 to vector<2x256xf32>
    %371 = arith.mulf %59, %370 : vector<2x256xf32>
    %c12 = arith.constant 12 : index
    %372 = memref.load %arg2[%c12] : memref<98xf32, #tpu.memory_space<smem>>
    %373 = vector.broadcast %372 : f32 to vector<2x256xf32>
    %374 = arith.mulf %61, %373 : vector<2x256xf32>
    %375 = arith.addf %371, %374 : vector<2x256xf32>
    %c19 = arith.constant 19 : index
    %376 = memref.load %arg2[%c19] : memref<98xf32, #tpu.memory_space<smem>>
    %377 = vector.broadcast %376 : f32 to vector<2x256xf32>
    %378 = arith.mulf %63, %377 : vector<2x256xf32>
    %379 = arith.addf %375, %378 : vector<2x256xf32>
    %c26 = arith.constant 26 : index
    %380 = memref.load %arg2[%c26] : memref<98xf32, #tpu.memory_space<smem>>
    %381 = vector.broadcast %380 : f32 to vector<2x256xf32>
    %382 = arith.mulf %3, %381 : vector<2x256xf32>
    %383 = arith.addf %379, %382 : vector<2x256xf32>
    %c33 = arith.constant 33 : index
    %384 = memref.load %arg2[%c33] : memref<98xf32, #tpu.memory_space<smem>>
    %385 = vector.broadcast %384 : f32 to vector<2x256xf32>
    %386 = arith.mulf %65, %385 : vector<2x256xf32>
    %387 = arith.addf %383, %386 : vector<2x256xf32>
    %c40 = arith.constant 40 : index
    %388 = memref.load %arg2[%c40] : memref<98xf32, #tpu.memory_space<smem>>
    %389 = vector.broadcast %388 : f32 to vector<2x256xf32>
    %390 = arith.mulf %67, %389 : vector<2x256xf32>
    %391 = arith.addf %387, %390 : vector<2x256xf32>
    %c47 = arith.constant 47 : index
    %392 = memref.load %arg2[%c47] : memref<98xf32, #tpu.memory_space<smem>>
    %393 = vector.broadcast %392 : f32 to vector<2x256xf32>
    %394 = arith.mulf %69, %393 : vector<2x256xf32>
    %395 = arith.addf %391, %394 : vector<2x256xf32>
    %c54 = arith.constant 54 : index
    %396 = memref.load %arg2[%c54] : memref<98xf32, #tpu.memory_space<smem>>
    %397 = vector.broadcast %396 : f32 to vector<2x256xf32>
    %398 = arith.mulf %71, %397 : vector<2x256xf32>
    %399 = arith.addf %395, %398 : vector<2x256xf32>
    %c61 = arith.constant 61 : index
    %400 = memref.load %arg2[%c61] : memref<98xf32, #tpu.memory_space<smem>>
    %401 = vector.broadcast %400 : f32 to vector<2x256xf32>
    %402 = arith.mulf %73, %401 : vector<2x256xf32>
    %403 = arith.addf %399, %402 : vector<2x256xf32>
    %c68 = arith.constant 68 : index
    %404 = memref.load %arg2[%c68] : memref<98xf32, #tpu.memory_space<smem>>
    %405 = vector.broadcast %404 : f32 to vector<2x256xf32>
    %406 = arith.mulf %75, %405 : vector<2x256xf32>
    %407 = arith.addf %403, %406 : vector<2x256xf32>
    %c75 = arith.constant 75 : index
    %408 = memref.load %arg2[%c75] : memref<98xf32, #tpu.memory_space<smem>>
    %409 = vector.broadcast %408 : f32 to vector<2x256xf32>
    %410 = arith.mulf %4, %409 : vector<2x256xf32>
    %411 = arith.addf %407, %410 : vector<2x256xf32>
    %c82 = arith.constant 82 : index
    %412 = memref.load %arg2[%c82] : memref<98xf32, #tpu.memory_space<smem>>
    %413 = vector.broadcast %412 : f32 to vector<2x256xf32>
    %414 = arith.mulf %77, %413 : vector<2x256xf32>
    %415 = arith.addf %411, %414 : vector<2x256xf32>
    %c89 = arith.constant 89 : index
    %416 = memref.load %arg2[%c89] : memref<98xf32, #tpu.memory_space<smem>>
    %417 = vector.broadcast %416 : f32 to vector<2x256xf32>
    %418 = arith.mulf %79, %417 : vector<2x256xf32>
    %419 = arith.addf %415, %418 : vector<2x256xf32>
    %c96 = arith.constant 96 : index
    %420 = memref.load %arg2[%c96] : memref<98xf32, #tpu.memory_space<smem>>
    %421 = vector.broadcast %420 : f32 to vector<2x256xf32>
    %422 = arith.mulf %81, %421 : vector<2x256xf32>
    %423 = arith.addf %419, %422 : vector<2x256xf32>
    %c254_i32 = arith.constant 254 : i32
    %424 = tpu.dynamic_rotate %423 by %c254_i32 dim 1 : vector<2x256xf32>, i32 -> vector<2x256xf32>
    %425 = arith.mulf %424, %53 : vector<2x256xf32>
    %426 = arith.addf %368, %425 : vector<2x256xf32>
    %c6 = arith.constant 6 : index
    %427 = memref.load %arg2[%c6] : memref<98xf32, #tpu.memory_space<smem>>
    %428 = vector.broadcast %427 : f32 to vector<2x256xf32>
    %429 = arith.mulf %59, %428 : vector<2x256xf32>
    %c13 = arith.constant 13 : index
    %430 = memref.load %arg2[%c13] : memref<98xf32, #tpu.memory_space<smem>>
    %431 = vector.broadcast %430 : f32 to vector<2x256xf32>
    %432 = arith.mulf %61, %431 : vector<2x256xf32>
    %433 = arith.addf %429, %432 : vector<2x256xf32>
    %c20 = arith.constant 20 : index
    %434 = memref.load %arg2[%c20] : memref<98xf32, #tpu.memory_space<smem>>
    %435 = vector.broadcast %434 : f32 to vector<2x256xf32>
    %436 = arith.mulf %63, %435 : vector<2x256xf32>
    %437 = arith.addf %433, %436 : vector<2x256xf32>
    %c27 = arith.constant 27 : index
    %438 = memref.load %arg2[%c27] : memref<98xf32, #tpu.memory_space<smem>>
    %439 = vector.broadcast %438 : f32 to vector<2x256xf32>
    %440 = arith.mulf %3, %439 : vector<2x256xf32>
    %441 = arith.addf %437, %440 : vector<2x256xf32>
    %c34 = arith.constant 34 : index
    %442 = memref.load %arg2[%c34] : memref<98xf32, #tpu.memory_space<smem>>
    %443 = vector.broadcast %442 : f32 to vector<2x256xf32>
    %444 = arith.mulf %65, %443 : vector<2x256xf32>
    %445 = arith.addf %441, %444 : vector<2x256xf32>
    %c41 = arith.constant 41 : index
    %446 = memref.load %arg2[%c41] : memref<98xf32, #tpu.memory_space<smem>>
    %447 = vector.broadcast %446 : f32 to vector<2x256xf32>
    %448 = arith.mulf %67, %447 : vector<2x256xf32>
    %449 = arith.addf %445, %448 : vector<2x256xf32>
    %c48 = arith.constant 48 : index
    %450 = memref.load %arg2[%c48] : memref<98xf32, #tpu.memory_space<smem>>
    %451 = vector.broadcast %450 : f32 to vector<2x256xf32>
    %452 = arith.mulf %69, %451 : vector<2x256xf32>
    %453 = arith.addf %449, %452 : vector<2x256xf32>
    %c55 = arith.constant 55 : index
    %454 = memref.load %arg2[%c55] : memref<98xf32, #tpu.memory_space<smem>>
    %455 = vector.broadcast %454 : f32 to vector<2x256xf32>
    %456 = arith.mulf %71, %455 : vector<2x256xf32>
    %457 = arith.addf %453, %456 : vector<2x256xf32>
    %c62 = arith.constant 62 : index
    %458 = memref.load %arg2[%c62] : memref<98xf32, #tpu.memory_space<smem>>
    %459 = vector.broadcast %458 : f32 to vector<2x256xf32>
    %460 = arith.mulf %73, %459 : vector<2x256xf32>
    %461 = arith.addf %457, %460 : vector<2x256xf32>
    %c69 = arith.constant 69 : index
    %462 = memref.load %arg2[%c69] : memref<98xf32, #tpu.memory_space<smem>>
    %463 = vector.broadcast %462 : f32 to vector<2x256xf32>
    %464 = arith.mulf %75, %463 : vector<2x256xf32>
    %465 = arith.addf %461, %464 : vector<2x256xf32>
    %c76 = arith.constant 76 : index
    %466 = memref.load %arg2[%c76] : memref<98xf32, #tpu.memory_space<smem>>
    %467 = vector.broadcast %466 : f32 to vector<2x256xf32>
    %468 = arith.mulf %4, %467 : vector<2x256xf32>
    %469 = arith.addf %465, %468 : vector<2x256xf32>
    %c83 = arith.constant 83 : index
    %470 = memref.load %arg2[%c83] : memref<98xf32, #tpu.memory_space<smem>>
    %471 = vector.broadcast %470 : f32 to vector<2x256xf32>
    %472 = arith.mulf %77, %471 : vector<2x256xf32>
    %473 = arith.addf %469, %472 : vector<2x256xf32>
    %c90 = arith.constant 90 : index
    %474 = memref.load %arg2[%c90] : memref<98xf32, #tpu.memory_space<smem>>
    %475 = vector.broadcast %474 : f32 to vector<2x256xf32>
    %476 = arith.mulf %79, %475 : vector<2x256xf32>
    %477 = arith.addf %473, %476 : vector<2x256xf32>
    %c97 = arith.constant 97 : index
    %478 = memref.load %arg2[%c97] : memref<98xf32, #tpu.memory_space<smem>>
    %479 = vector.broadcast %478 : f32 to vector<2x256xf32>
    %480 = arith.mulf %81, %479 : vector<2x256xf32>
    %481 = arith.addf %477, %480 : vector<2x256xf32>
    %c253_i32 = arith.constant 253 : i32
    %482 = tpu.dynamic_rotate %481 by %c253_i32 dim 1 : vector<2x256xf32>, i32 -> vector<2x256xf32>
    %483 = arith.mulf %482, %57 : vector<2x256xf32>
    %484 = arith.addf %426, %483 : vector<2x256xf32>
    %485 = arith.negf %484 : vector<2x256xf32>
    %486 = math.exp %485 : vector<2x256xf32>
    %cst_20 = arith.constant 1.000000e+00 : f32
    %487 = vector.broadcast %cst_20 : f32 to vector<2x256xf32>
    %488 = arith.addf %487, %486 : vector<2x256xf32>
    %489 = arith.divf %487, %488 : vector<2x256xf32>
    %c0_21 = arith.constant 0 : index
    %c0_22 = arith.constant 0 : index
    %490 = vector.load %arg3[%c0_21, %c0_22] : memref<2x256xf32, #tpu.memory_space<vmem>>, vector<2x256xf32>
    tpu.vector_store %arg3[%c0_21, %c0_22], %489 {strides = array<i32>} : memref<2x256xf32, #tpu.memory_space<vmem>>, vector<2x256xf32>,
    return
  }
  func.func @transform_0(%arg0: i32) -> (i32, i32, i32) {
    %c0_i32 = arith.constant 0 : i32
    %c0_i32_0 = arith.constant 0 : i32
    %c0_i32_1 = arith.constant 0 : i32
    return %arg0, %c0_i32, %c0_i32_0 : i32, i32, i32
  }
  func.func @transform_1(%arg0: i32) -> i32 {
    %c0_i32 = arith.constant 0 : i32
    %c0_i32_0 = arith.constant 0 : i32
    return %c0_i32 : i32
  }
  func.func @transform_2(%arg0: i32) -> (i32, i32) {
    %c0_i32 = arith.constant 0 : i32
    %c0_i32_0 = arith.constant 0 : i32
    return %arg0, %c0_i32 : i32, i32
  }
}

</mosaic_0001>

<llo_original>
// kernel: tpu_custom_call.1
$region0: #{tpu_custom_call.1}
  #allocation0 [shape = 'u32[]', space=smem, size = 0x4, offset = 0x4, fixed_abs, tag = 'smem constant byte address 0x4 - core index']
  #allocation1 [shape = 'u32[72,128]{1,0:T(1,128)}', space=vmem, size = 0x9000, scoped, tag = 'internal scratch']
  %s0 = inlined_call_operand.hbm [shape: f32[2,4,256], index: 0, kind: input, shape index: {}]
  %s1 = inlined_call_operand.hbm [shape: f32[98], index: 1, kind: input, shape index: {}]
  %s2 = inlined_call_operand.hbm [shape: f32[2,256], index: 2, kind: output, shape index: {}]
  %s3 = sld [smem:[#allocation0]]
  $region26: #{tpu_custom_call.1} parent=0
    _
  %s5 = ssub.s32 1, %s3
  %s6 = scalar_select 0, %s5, %s3
  $region1: #{tpu_custom_call.1} parent=0
    #allocation2 [shape = 'u8[8192]{0}', space=vmem, size = 0x2000, scoped, tag = 'input window, operand 0, single buffered']
    #allocation3 [shape = 's32[1]{0}', space=sflag, size = 0x4, scoped, tag = 'scoped memory for tpu_custom_call.1']
    #allocation4 [shape = 's32[1]{0}', space=sflag, size = 0x4, scoped, tag = 'scoped memory for tpu_custom_call.1']
    #allocation5 [shape = 's32[1]{0}', space=sflag, size = 0x4, scoped, tag = 'scoped memory for tpu_custom_call.1']
    #allocation6 [shape = 'u8[512]{0}', space=smem, size = 0x200, scoped, tag = 'input window, operand 1, single buffered']
    #allocation7 [shape = 'u8[2048]{0}', space=vmem, size = 0x800, scoped, tag = 'output window, operand 0, single buffered']
    %7 = vsyncpa [#allocation3], 0
    %8 = vsyncpa [#allocation5], 0
    %9 = vsyncpa [#allocation4], 0
    // Predicated region
    $region2: #{tpu_custom_call.1} parent=1 // pred_check
      _
    $region3: #{tpu_custom_call.1} parent=1 // pred_check_branch
      %11 = sbr.rel (0) target = $region5
    $region4: #{tpu_custom_call.1} parent=1 // pred_region
      %13 = vsyncadd [#allocation3], 0
      %s14 = sshll.u32 %s0, 4
      %s15 = int_to_ptr.hbm [resolvable:$true] %s14
      %s16 = sshll.u32 [#allocation2], 4
      %s17 = int_to_ptr.vmem [resolvable:$true] %s16
      %22 = dma.hbm_to_vmem [thread:$0]  %s15, 256, %s17, [#allocation3], 128, 128, 8
    $region5: #{tpu_custom_call.1} parent=1 // pred_fallthru
      _
    // Predicated region
    $region6: #{tpu_custom_call.1} parent=1 // pred_check
      _
    $region7: #{tpu_custom_call.1} parent=1 // pred_check_branch
      %24 = sbr.rel (0) target = $region9
    $region8: #{tpu_custom_call.1} parent=1 // pred_region
      %26 = vsyncadd [#allocation5], 0
      %s28 = sshll.u32 %s1, 4
      %s29 = int_to_ptr.hbm [resolvable:$true] %s28
      %31 = dma.hbm_to_smem %s29, 16, [#allocation6], [#allocation5]
    $region9: #{tpu_custom_call.1} parent=1 // pred_fallthru
      _
    // Predicated region
    $region10: #{tpu_custom_call.1} parent=1 // pred_check
      _
    $region11: #{tpu_custom_call.1} parent=1 // pred_check_branch
      %33 = sbr.rel (0) target = $region13
    $region12: #{tpu_custom_call.1} parent=1 // pred_region
      %35 = dma.done [#allocation3], 256
    $region13: #{tpu_custom_call.1} parent=1 // pred_fallthru
      _
    // Predicated region
    $region14: #{tpu_custom_call.1} parent=1 // pred_check
      _
    $region15: #{tpu_custom_call.1} parent=1 // pred_check_branch
      %37 = sbr.rel (0) target = $region17
    $region16: #{tpu_custom_call.1} parent=1 // pred_region
      %39 = dma.done [#allocation5], 16
    $region17: #{tpu_custom_call.1} parent=1 // pred_fallthru
      _
    %40 = sfence
    %v41 = vld [vmem:[#allocation2] sm:$0xff]
    %v42 = vld [vmem:[#allocation2 + $0x8] sm:$0xff]
    %45 = vst [vmem:[#allocation1] ss:$2 sm:$0xff] %v41
    %v46 = vld.sshfl [vmem:[#allocation1] sm:$0xff pattern:$0x75316420]
    %v47 = vld.sshfl [vmem:[#allocation1 + $0x8] sm:$0xff pattern:$0x75316420]
    %s48 = scalar_lea.vmem [#allocation1], 16
    %49 = vst [vmem:[%s48] ss:$2 sm:$0xff] %v42
    %v50 = vld.sshfl [vmem:[#allocation1 + $0x10] sm:$0xff pattern:$0x75316420]
    %v51 = vld.sshfl [vmem:[#allocation1 + $0x18] sm:$0xff pattern:$0x75316420]
    %vm56 = vcmask 1043456
    %v57 = vsel %vm56, %v46, 0.0
    %v58 = vrot.slane %v57, 4
    %v59 = vadd.f32 %v57, %v58
    %v60 = vrot.slane %v59, 2
    %v61 = vadd.f32 %v59, %v60
    %v62 = vrot.slane %v61, 1
    %v63 = vadd.f32 %v61, %v62
    %v64 = vsel %vm56, %v47, 0.0
    %v65 = vrot.slane %v64, 4
    %v66 = vadd.f32 %v64, %v65
    %v67 = vrot.slane %v66, 2
    %v68 = vadd.f32 %v66, %v67
    %v69 = vrot.slane %v68, 1
    %v70 = vadd.f32 %v68, %v69
    %v71 = vsel %vm56, %v50, 0.0
    %v72 = vrot.slane %v71, 4
    %v73 = vadd.f32 %v71, %v72
    %v74 = vrot.slane %v73, 2
    %v75 = vadd.f32 %v73, %v74
    %v76 = vrot.slane %v75, 1
    %v77 = vadd.f32 %v75, %v76
    %v78 = vsel %vm56, %v51, 0.0
    %v79 = vrot.slane %v78, 4
    %v80 = vadd.f32 %v78, %v79
    %v81 = vrot.slane %v80, 2
    %v82 = vadd.f32 %v80, %v81
    %v83 = vrot.slane %v82, 1
    %v84 = vadd.f32 %v82, %v83
    %v85 = vmul.f32 %v63, 0.25
    %v86 = vmul.f32 %v70, 0.25
    %v87 = vmul.f32 %v77, 0.25
    %v88 = vmul.f32 %v84, 0.25
    %89 = vst [vmem:[#allocation1] ss:$2 sm:$0xff] %v41
    %v90 = vld.sshfl [vmem:[#allocation1] sm:$0xff pattern:$0x75316420]
    %v91 = vld.sshfl [vmem:[#allocation1 + $0x8] sm:$0xff pattern:$0x75316420]
    %s92 = scalar_lea.vmem [#allocation1], 16
    %93 = vst [vmem:[%s92] ss:$2 sm:$0xff] %v42
    %v94 = vld.sshfl [vmem:[#allocation1 + $0x10] sm:$0xff pattern:$0x75316420]
    %v95 = vld.sshfl [vmem:[#allocation1 + $0x18] sm:$0xff pattern:$0x75316420]
    %v100 = vsel %vm56, %v90, -inf
    %v101 = vrot.slane %v100, 4
    %v102 = vmax.f32 %v100, %v101
    %v103 = vrot.slane %v102, 2
    %v104 = vmax.f32 %v102, %v103
    %v105 = vrot.slane %v104, 1
    %v106 = vmax.f32 %v104, %v105
    %v107 = vsel %vm56, %v91, -inf
    %v108 = vrot.slane %v107, 4
    %v109 = vmax.f32 %v107, %v108
    %v110 = vrot.slane %v109, 2
    %v111 = vmax.f32 %v109, %v110
    %v112 = vrot.slane %v111, 1
    %v113 = vmax.f32 %v111, %v112
    %v114 = vsel %vm56, %v94, -inf
    %v115 = vrot.slane %v114, 4
    %v116 = vmax.f32 %v114, %v115
    %v117 = vrot.slane %v116, 2
    %v118 = vmax.f32 %v116, %v117
    %v119 = vrot.slane %v118, 1
    %v120 = vmax.f32 %v118, %v119
    %v121 = vsel %vm56, %v95, -inf
    %v122 = vrot.slane %v121, 4
    %v123 = vmax.f32 %v121, %v122
    %v124 = vrot.slane %v123, 2
    %v125 = vmax.f32 %v123, %v124
    %v126 = vrot.slane %v125, 1
    %v127 = vmax.f32 %v125, %v126
    %v128 = vlaneseq
    %v129 = vand.u32 %v128, 127
    %v130 = vadd.s32 %v129, 128
    %v131 = vand.u32 %v129, 15
    %v132 = vand.u32 %v130, 15
    %v133 = vshra.s32 %v129, 4
    %v134 = vshra.s32 %v130, 4
    %vm135 = vcmp.ge.s32.totalorder %v133, 3
    %vm136 = vcmp.ge.s32.totalorder %v134, 3
    %v137 = vsel %vm135, 1, 0
    %v138 = vsel %vm136, 1, 0
    %v139 = vcvt.s32.f32 %v137
    %v140 = vcvt.s32.f32 %v138
    %vm141 = vcmp.ge.s32.totalorder %v133, 2
    %vm142 = vcmp.ge.s32.totalorder %v134, 2
    %v143 = vsel %vm141, 1, 0
    %v144 = vsel %vm142, 1, 0
    %v145 = vcvt.s32.f32 %v143
    %v146 = vcvt.s32.f32 %v144
    %vm147 = vcmp.ge.s32.totalorder %v133, 1
    %vm148 = vcmp.ge.s32.totalorder %v134, 1
    %v149 = vsel %vm147, 1, 0
    %v150 = vsel %vm148, 1, 0
    %v151 = vcvt.s32.f32 %v149
    %v152 = vcvt.s32.f32 %v150
    %vm153 = vcmp.le.s32.totalorder %v133, 14
    %vm154 = vcmp.le.s32.totalorder %v134, 14
    %v155 = vsel %vm153, 1, 0
    %v156 = vsel %vm154, 1, 0
    %v157 = vcvt.s32.f32 %v155
    %v158 = vcvt.s32.f32 %v156
    %vm159 = vcmp.le.s32.totalorder %v133, 13
    %vm160 = vcmp.le.s32.totalorder %v134, 13
    %v161 = vsel %vm159, 1, 0
    %v162 = vsel %vm160, 1, 0
    %v163 = vcvt.s32.f32 %v161
    %v164 = vcvt.s32.f32 %v162
    %vm165 = vcmp.le.s32.totalorder %v133, 12
    %vm166 = vcmp.le.s32.totalorder %v134, 12
    %v167 = vsel %vm165, 1, 0
    %v168 = vsel %vm166, 1, 0
    %v169 = vcvt.s32.f32 %v167
    %v170 = vcvt.s32.f32 %v168
    %vm171 = vcmp.ge.s32.totalorder %v131, 3
    %vm172 = vcmp.ge.s32.totalorder %v132, 3
    %v173 = vsel %vm171, 1, 0
    %v174 = vsel %vm172, 1, 0
    %v175 = vcvt.s32.f32 %v173
    %v176 = vcvt.s32.f32 %v174
    %vm177 = vcmp.ge.s32.totalorder %v131, 2
    %vm178 = vcmp.ge.s32.totalorder %v132, 2
    %v179 = vsel %vm177, 1, 0
    %v180 = vsel %vm178, 1, 0
    %v181 = vcvt.s32.f32 %v179
    %v182 = vcvt.s32.f32 %v180
    %vm183 = vcmp.ge.s32.totalorder %v131, 1
    %vm184 = vcmp.ge.s32.totalorder %v132, 1
    %v185 = vsel %vm183, 1, 0
    %v186 = vsel %vm184, 1, 0
    %v187 = vcvt.s32.f32 %v185
    %v188 = vcvt.s32.f32 %v186
    %vm189 = vcmp.le.s32.totalorder %v131, 14
    %vm190 = vcmp.le.s32.totalorder %v132, 14
    %v191 = vsel %vm189, 1, 0
    %v192 = vsel %vm190, 1, 0
    %v193 = vcvt.s32.f32 %v191
    %v194 = vcvt.s32.f32 %v192
    %vm195 = vcmp.le.s32.totalorder %v131, 13
    %vm196 = vcmp.le.s32.totalorder %v132, 13
    %v197 = vsel %vm195, 1, 0
    %v198 = vsel %vm196, 1, 0
    %v199 = vcvt.s32.f32 %v197
    %v200 = vcvt.s32.f32 %v198
    %vm201 = vcmp.le.s32.totalorder %v131, 12
    %vm202 = vcmp.le.s32.totalorder %v132, 12
    %v203 = vsel %vm201, 1, 0
    %v204 = vsel %vm202, 1, 0
    %v205 = vcvt.s32.f32 %v203
    %v206 = vcvt.s32.f32 %v204
    %vm211 = vcmask 1041409
    %v212 = vsel %vm211, %v87, %v85
    %v213 = vsel %vm211, %v88, %v86
    %216 = vrot.lane.b32.xlu0 %v212, 48
    %v217 = vpop.permute.xlu0 %216
    %218 = vrot.lane.b32.xlu0 %v213, 48
    %v219 = vpop.permute.xlu0 %218
    %vm220 = vcmp.lt.s32.totalorder %v129, 48
    %v221 = vsel %vm220, %v217, %v219
    %v222 = vsel %vm220, %v219, %v217
    %v223 = vmul.f32 %v222, %v139
    %v224 = vmul.f32 %v221, %v140
    %225 = vrot.lane.b32.xlu0 %v212, 32
    %v226 = vpop.permute.xlu0 %225
    %227 = vrot.lane.b32.xlu0 %v213, 32
    %v228 = vpop.permute.xlu0 %227
    %vm229 = vcmp.lt.s32.totalorder %v129, 32
    %v230 = vsel %vm229, %v226, %v228
    %v231 = vsel %vm229, %v228, %v226
    %v232 = vmul.f32 %v231, %v145
    %v233 = vmul.f32 %v230, %v146
    %234 = vrot.lane.b32.xlu0 %v212, 16
    %v235 = vpop.permute.xlu0 %234
    %236 = vrot.lane.b32.xlu0 %v213, 16
    %v237 = vpop.permute.xlu0 %236
    %vm238 = vcmp.lt.s32.totalorder %v129, 16
    %v239 = vsel %vm238, %v235, %v237
    %v240 = vsel %vm238, %v237, %v235
    %v241 = vmul.f32 %v240, %v151
    %v242 = vmul.f32 %v239, %v152
    %243 = vrot.lane.b32.xlu0 %v212, 112
    %v244 = vpop.permute.xlu0 %243
    %245 = vrot.lane.b32.xlu0 %v213, 112
    %v246 = vpop.permute.xlu0 %245
    %vm247 = vcmp.lt.s32.totalorder %v129, 112
    %v248 = vsel %vm247, %v244, %v246
    %v249 = vsel %vm247, %v246, %v244
    %v250 = vmul.f32 %v248, %v157
    %v251 = vmul.f32 %v249, %v158
    %252 = vrot.lane.b32.xlu0 %v212, 96
    %v253 = vpop.permute.xlu0 %252
    %254 = vrot.lane.b32.xlu0 %v213, 96
    %v255 = vpop.permute.xlu0 %254
    %vm256 = vcmp.lt.s32.totalorder %v129, 96
    %v257 = vsel %vm256, %v253, %v255
    %v258 = vsel %vm256, %v255, %v253
    %v259 = vmul.f32 %v257, %v163
    %v260 = vmul.f32 %v258, %v164
    %261 = vrot.lane.b32.xlu0 %v212, 80
    %v262 = vpop.permute.xlu0 %261
    %263 = vrot.lane.b32.xlu0 %v213, 80
    %v264 = vpop.permute.xlu0 %263
    %vm265 = vcmp.lt.s32.totalorder %v129, 80
    %v266 = vsel %vm265, %v262, %v264
    %v267 = vsel %vm265, %v264, %v262
    %v268 = vmul.f32 %v266, %v169
    %v269 = vmul.f32 %v267, %v170
    %v274 = vsel %vm211, %v120, %v106
    %v275 = vsel %vm211, %v127, %v113
    %278 = vrot.lane.b32.xlu0 %v274, 48
    %v279 = vpop.permute.xlu0 %278
    %280 = vrot.lane.b32.xlu0 %v275, 48
    %v281 = vpop.permute.xlu0 %280
    %v282 = vsel %vm220, %v279, %v281
    %v283 = vsel %vm220, %v281, %v279
    %v284 = vmul.f32 %v283, %v139
    %v285 = vmul.f32 %v282, %v140
    %286 = vrot.lane.b32.xlu0 %v274, 32
    %v287 = vpop.permute.xlu0 %286
    %288 = vrot.lane.b32.xlu0 %v275, 32
    %v289 = vpop.permute.xlu0 %288
    %v290 = vsel %vm229, %v287, %v289
    %v291 = vsel %vm229, %v289, %v287
    %v292 = vmul.f32 %v291, %v145
    %v293 = vmul.f32 %v290, %v146
    %294 = vrot.lane.b32.xlu0 %v274, 16
    %v295 = vpop.permute.xlu0 %294
    %296 = vrot.lane.b32.xlu0 %v275, 16
    %v297 = vpop.permute.xlu0 %296
    %v298 = vsel %vm238, %v295, %v297
    %v299 = vsel %vm238, %v297, %v295
    %v300 = vmul.f32 %v299, %v151
    %v301 = vmul.f32 %v298, %v152
    %302 = vrot.lane.b32.xlu0 %v274, 112
    %v303 = vpop.permute.xlu0 %302
    %304 = vrot.lane.b32.xlu0 %v275, 112
    %v305 = vpop.permute.xlu0 %304
    %v306 = vsel %vm247, %v303, %v305
    %v307 = vsel %vm247, %v305, %v303
    %v308 = vmul.f32 %v306, %v157
    %v309 = vmul.f32 %v307, %v158
    %310 = vrot.lane.b32.xlu0 %v274, 96
    %v311 = vpop.permute.xlu0 %310
    %312 = vrot.lane.b32.xlu0 %v275, 96
    %v313 = vpop.permute.xlu0 %312
    %v314 = vsel %vm256, %v311, %v313
    %v315 = vsel %vm256, %v313, %v311
    %v316 = vmul.f32 %v314, %v163
    %v317 = vmul.f32 %v315, %v164
    %318 = vrot.lane.b32.xlu0 %v274, 80
    %v319 = vpop.permute.xlu0 %318
    %320 = vrot.lane.b32.xlu0 %v275, 80
    %v321 = vpop.permute.xlu0 %320
    %v322 = vsel %vm265, %v319, %v321
    %v323 = vsel %vm265, %v321, %v319
    %v324 = vmul.f32 %v322, %v169
    %v325 = vmul.f32 %v323, %v170
    %s326 = sld [smem:[#allocation6]]
    %v327 = vstv %s326
    %v328 = vmul.f32 %v223, %v327
    %v329 = vmul.f32 %v224, %v327
    %s330 = sld [smem:[#allocation6 + $0x7]]
    %v331 = vstv %s330
    %v332 = vmul.f32 %v232, %v331
    %v333 = vmul.f32 %v233, %v331
    %v334 = vadd.f32 %v328, %v332
    %v335 = vadd.f32 %v329, %v333
    %s336 = sld [smem:[#allocation6 + $0xe]]
    %v337 = vstv %s336
    %v338 = vmul.f32 %v241, %v337
    %v339 = vmul.f32 %v242, %v337
    %v340 = vadd.f32 %v334, %v338
    %v341 = vadd.f32 %v335, %v339
    %s342 = sld [smem:[#allocation6 + $0x15]]
    %v343 = vstv %s342
    %v344 = vmul.f32 %v85, %v343
    %v345 = vmul.f32 %v86, %v343
    %v346 = vmul.f32 %v87, %v343
    %v347 = vmul.f32 %v88, %v343
    %v352 = vsel %vm211, %v346, %v344
    %v353 = vsel %vm211, %v347, %v345
    %v356 = vadd.f32 %v340, %v352
    %v357 = vadd.f32 %v341, %v353
    %s358 = sld [smem:[#allocation6 + $0x1c]]
    %v359 = vstv %s358
    %v360 = vmul.f32 %v250, %v359
    %v361 = vmul.f32 %v251, %v359
    %v362 = vadd.f32 %v356, %v360
    %v363 = vadd.f32 %v357, %v361
    %s364 = sld [smem:[#allocation6 + $0x23]]
    %v365 = vstv %s364
    %v366 = vmul.f32 %v259, %v365
    %v367 = vmul.f32 %v260, %v365
    %v368 = vadd.f32 %v362, %v366
    %v369 = vadd.f32 %v363, %v367
    %s370 = sld [smem:[#allocation6 + $0x2a]]
    %v371 = vstv %s370
    %v372 = vmul.f32 %v268, %v371
    %v373 = vmul.f32 %v269, %v371
    %v374 = vadd.f32 %v368, %v372
    %v375 = vadd.f32 %v369, %v373
    %s376 = sld [smem:[#allocation6 + $0x31]]
    %v377 = vstv %s376
    %v378 = vmul.f32 %v284, %v377
    %v379 = vmul.f32 %v285, %v377
    %v380 = vadd.f32 %v374, %v378
    %v381 = vadd.f32 %v375, %v379
    %s382 = sld [smem:[#allocation6 + $0x38]]
    %v383 = vstv %s382
    %v384 = vmul.f32 %v292, %v383
    %v385 = vmul.f32 %v293, %v383
    %v386 = vadd.f32 %v380, %v384
    %v387 = vadd.f32 %v381, %v385
    %s388 = sld [smem:[#allocation6 + $0x3f]]
    %v389 = vstv %s388
    %v390 = vmul.f32 %v300, %v389
    %v391 = vmul.f32 %v301, %v389
    %v392 = vadd.f32 %v386, %v390
    %v393 = vadd.f32 %v387, %v391
    %s394 = sld [smem:[#allocation6 + $0x46]]
    %v395 = vstv %s394
    %v396 = vmul.f32 %v106, %v395
    %v397 = vmul.f32 %v113, %v395
    %v398 = vmul.f32 %v120, %v395
    %v399 = vmul.f32 %v127, %v395
    %v404 = vsel %vm211, %v398, %v396
    %v405 = vsel %vm211, %v399, %v397
    %v408 = vadd.f32 %v392, %v404
    %v409 = vadd.f32 %v393, %v405
    %s410 = sld [smem:[#allocation6 + $0x4d]]
    %v411 = vstv %s410
    %v412 = vmul.f32 %v308, %v411
    %v413 = vmul.f32 %v309, %v411
    %v414 = vadd.f32 %v408, %v412
    %v415 = vadd.f32 %v409, %v413
    %s416 = sld [smem:[#allocation6 + $0x54]]
    %v417 = vstv %s416
    %v418 = vmul.f32 %v316, %v417
    %v419 = vmul.f32 %v317, %v417
    %v420 = vadd.f32 %v414, %v418
    %v421 = vadd.f32 %v415, %v419
    %s422 = sld [smem:[#allocation6 + $0x5b]]
    %v423 = vstv %s422
    %v424 = vmul.f32 %v324, %v423
    %v425 = vmul.f32 %v325, %v423
    %v426 = vadd.f32 %v420, %v424
    %v427 = vadd.f32 %v421, %v425
    %428 = vrot.lane.b32.xlu0 %v426, 3
    %v429 = vpop.permute.xlu0 %428
    %430 = vrot.lane.b32.xlu0 %v427, 3
    %v431 = vpop.permute.xlu0 %430
    %vm432 = vcmp.lt.s32.totalorder %v129, 3
    %v433 = vsel %vm432, %v429, %v431
    %v434 = vsel %vm432, %v431, %v429
    %v435 = vmul.f32 %v434, %v175
    %v436 = vmul.f32 %v433, %v176
    %s437 = sld [smem:[#allocation6 + $0x1]]
    %v438 = vstv %s437
    %v439 = vmul.f32 %v223, %v438
    %v440 = vmul.f32 %v224, %v438
    %s441 = sld [smem:[#allocation6 + $0x8]]
    %v442 = vstv %s441
    %v443 = vmul.f32 %v232, %v442
    %v444 = vmul.f32 %v233, %v442
    %v445 = vadd.f32 %v439, %v443
    %v446 = vadd.f32 %v440, %v444
    %s447 = sld [smem:[#allocation6 + $0xf]]
    %v448 = vstv %s447
    %v449 = vmul.f32 %v241, %v448
    %v450 = vmul.f32 %v242, %v448
    %v451 = vadd.f32 %v445, %v449
    %v452 = vadd.f32 %v446, %v450
    %s453 = sld [smem:[#allocation6 + $0x16]]
    %v454 = vstv %s453
    %v455 = vmul.f32 %v85, %v454
    %v456 = vmul.f32 %v86, %v454
    %v457 = vmul.f32 %v87, %v454
    %v458 = vmul.f32 %v88, %v454
    %v463 = vsel %vm211, %v457, %v455
    %v464 = vsel %vm211, %v458, %v456
    %v467 = vadd.f32 %v451, %v463
    %v468 = vadd.f32 %v452, %v464
    %s469 = sld [smem:[#allocation6 + $0x1d]]
    %v470 = vstv %s469
    %v471 = vmul.f32 %v250, %v470
    %v472 = vmul.f32 %v251, %v470
    %v473 = vadd.f32 %v467, %v471
    %v474 = vadd.f32 %v468, %v472
    %s475 = sld [smem:[#allocation6 + $0x24]]
    %v476 = vstv %s475
    %v477 = vmul.f32 %v259, %v476
    %v478 = vmul.f32 %v260, %v476
    %v479 = vadd.f32 %v473, %v477
    %v480 = vadd.f32 %v474, %v478
    %s481 = sld [smem:[#allocation6 + $0x2b]]
    %v482 = vstv %s481
    %v483 = vmul.f32 %v268, %v482
    %v484 = vmul.f32 %v269, %v482
    %v485 = vadd.f32 %v479, %v483
    %v486 = vadd.f32 %v480, %v484
    %s487 = sld [smem:[#allocation6 + $0x32]]
    %v488 = vstv %s487
    %v489 = vmul.f32 %v284, %v488
    %v490 = vmul.f32 %v285, %v488
    %v491 = vadd.f32 %v485, %v489
    %v492 = vadd.f32 %v486, %v490
    %s493 = sld [smem:[#allocation6 + $0x39]]
    %v494 = vstv %s493
    %v495 = vmul.f32 %v292, %v494
    %v496 = vmul.f32 %v293, %v494
    %v497 = vadd.f32 %v491, %v495
    %v498 = vadd.f32 %v492, %v496
    %s499 = sld [smem:[#allocation6 + $0x40]]
    %v500 = vstv %s499
    %v501 = vmul.f32 %v300, %v500
    %v502 = vmul.f32 %v301, %v500
    %v503 = vadd.f32 %v497, %v501
    %v504 = vadd.f32 %v498, %v502
    %s505 = sld [smem:[#allocation6 + $0x47]]
    %v506 = vstv %s505
    %v507 = vmul.f32 %v106, %v506
    %v508 = vmul.f32 %v113, %v506
    %v509 = vmul.f32 %v120, %v506
    %v510 = vmul.f32 %v127, %v506
    %v515 = vsel %vm211, %v509, %v507
    %v516 = vsel %vm211, %v510, %v508
    %v519 = vadd.f32 %v503, %v515
    %v520 = vadd.f32 %v504, %v516
    %s521 = sld [smem:[#allocation6 + $0x4e]]
    %v522 = vstv %s521
    %v523 = vmul.f32 %v308, %v522
    %v524 = vmul.f32 %v309, %v522
    %v525 = vadd.f32 %v519, %v523
    %v526 = vadd.f32 %v520, %v524
    %s527 = sld [smem:[#allocation6 + $0x55]]
    %v528 = vstv %s527
    %v529 = vmul.f32 %v316, %v528
    %v530 = vmul.f32 %v317, %v528
    %v531 = vadd.f32 %v525, %v529
    %v532 = vadd.f32 %v526, %v530
    %s533 = sld [smem:[#allocation6 + $0x5c]]
    %v534 = vstv %s533
    %v535 = vmul.f32 %v324, %v534
    %v536 = vmul.f32 %v325, %v534
    %v537 = vadd.f32 %v531, %v535
    %v538 = vadd.f32 %v532, %v536
    %539 = vrot.lane.b32.xlu0 %v537, 2
    %v540 = vpop.permute.xlu0 %539
    %541 = vrot.lane.b32.xlu0 %v538, 2
    %v542 = vpop.permute.xlu0 %541
    %vm543 = vcmp.lt.s32.totalorder %v129, 2
    %v544 = vsel %vm543, %v540, %v542
    %v545 = vsel %vm543, %v542, %v540
    %v546 = vmul.f32 %v545, %v181
    %v547 = vmul.f32 %v544, %v182
    %v548 = vadd.f32 %v435, %v546
    %v549 = vadd.f32 %v436, %v547
    %s550 = sld [smem:[#allocation6 + $0x2]]
    %v551 = vstv %s550
    %v552 = vmul.f32 %v223, %v551
    %v553 = vmul.f32 %v224, %v551
    %s554 = sld [smem:[#allocation6 + $0x9]]
    %v555 = vstv %s554
    %v556 = vmul.f32 %v232, %v555
    %v557 = vmul.f32 %v233, %v555
    %v558 = vadd.f32 %v552, %v556
    %v559 = vadd.f32 %v553, %v557
    %s560 = sld [smem:[#allocation6 + $0x10]]
    %v561 = vstv %s560
    %v562 = vmul.f32 %v241, %v561
    %v563 = vmul.f32 %v242, %v561
    %v564 = vadd.f32 %v558, %v562
    %v565 = vadd.f32 %v559, %v563
    %s566 = sld [smem:[#allocation6 + $0x17]]
    %v567 = vstv %s566
    %v568 = vmul.f32 %v85, %v567
    %v569 = vmul.f32 %v86, %v567
    %v570 = vmul.f32 %v87, %v567
    %v571 = vmul.f32 %v88, %v567
    %v576 = vsel %vm211, %v570, %v568
    %v577 = vsel %vm211, %v571, %v569
    %v580 = vadd.f32 %v564, %v576
    %v581 = vadd.f32 %v565, %v577
    %s582 = sld [smem:[#allocation6 + $0x1e]]
    %v583 = vstv %s582
    %v584 = vmul.f32 %v250, %v583
    %v585 = vmul.f32 %v251, %v583
    %v586 = vadd.f32 %v580, %v584
    %v587 = vadd.f32 %v581, %v585
    %s588 = sld [smem:[#allocation6 + $0x25]]
    %v589 = vstv %s588
    %v590 = vmul.f32 %v259, %v589
    %v591 = vmul.f32 %v260, %v589
    %v592 = vadd.f32 %v586, %v590
    %v593 = vadd.f32 %v587, %v591
    %s594 = sld [smem:[#allocation6 + $0x2c]]
    %v595 = vstv %s594
    %v596 = vmul.f32 %v268, %v595
    %v597 = vmul.f32 %v269, %v595
    %v598 = vadd.f32 %v592, %v596
    %v599 = vadd.f32 %v593, %v597
    %s600 = sld [smem:[#allocation6 + $0x33]]
    %v601 = vstv %s600
    %v602 = vmul.f32 %v284, %v601
    %v603 = vmul.f32 %v285, %v601
    %v604 = vadd.f32 %v598, %v602
    %v605 = vadd.f32 %v599, %v603
    %s606 = sld [smem:[#allocation6 + $0x3a]]
    %v607 = vstv %s606
    %v608 = vmul.f32 %v292, %v607
    %v609 = vmul.f32 %v293, %v607
    %v610 = vadd.f32 %v604, %v608
    %v611 = vadd.f32 %v605, %v609
    %s612 = sld [smem:[#allocation6 + $0x41]]
    %v613 = vstv %s612
    %v614 = vmul.f32 %v300, %v613
    %v615 = vmul.f32 %v301, %v613
    %v616 = vadd.f32 %v610, %v614
    %v617 = vadd.f32 %v611, %v615
    %s618 = sld [smem:[#allocation6 + $0x48]]
    %v619 = vstv %s618
    %v620 = vmul.f32 %v106, %v619
    %v621 = vmul.f32 %v113, %v619
    %v622 = vmul.f32 %v120, %v619
    %v623 = vmul.f32 %v127, %v619
    %v628 = vsel %vm211, %v622, %v620
    %v629 = vsel %vm211, %v623, %v621
    %v632 = vadd.f32 %v616, %v628
    %v633 = vadd.f32 %v617, %v629
    %s634 = sld [smem:[#allocation6 + $0x4f]]
    %v635 = vstv %s634
    %v636 = vmul.f32 %v308, %v635
    %v637 = vmul.f32 %v309, %v635
    %v638 = vadd.f32 %v632, %v636
    %v639 = vadd.f32 %v633, %v637
    %s640 = sld [smem:[#allocation6 + $0x56]]
    %v641 = vstv %s640
    %v642 = vmul.f32 %v316, %v641
    %v643 = vmul.f32 %v317, %v641
    %v644 = vadd.f32 %v638, %v642
    %v645 = vadd.f32 %v639, %v643
    %s646 = sld [smem:[#allocation6 + $0x5d]]
    %v647 = vstv %s646
    %v648 = vmul.f32 %v324, %v647
    %v649 = vmul.f32 %v325, %v647
    %v650 = vadd.f32 %v644, %v648
    %v651 = vadd.f32 %v645, %v649
    %652 = vrot.lane.b32.xlu0 %v650, 1
    %v653 = vpop.permute.xlu0 %652
    %654 = vrot.lane.b32.xlu0 %v651, 1
    %v655 = vpop.permute.xlu0 %654
    %vm656 = vcmp.lt.s32.totalorder %v129, 1
    %v657 = vsel %vm656, %v653, %v655
    %v658 = vsel %vm656, %v655, %v653
    %v659 = vmul.f32 %v658, %v187
    %v660 = vmul.f32 %v657, %v188
    %v661 = vadd.f32 %v548, %v659
    %v662 = vadd.f32 %v549, %v660
    %s663 = sld [smem:[#allocation6 + $0x3]]
    %v664 = vstv %s663
    %v665 = vmul.f32 %v223, %v664
    %v666 = vmul.f32 %v224, %v664
    %s667 = sld [smem:[#allocation6 + $0xa]]
    %v668 = vstv %s667
    %v669 = vmul.f32 %v232, %v668
    %v670 = vmul.f32 %v233, %v668
    %v671 = vadd.f32 %v665, %v669
    %v672 = vadd.f32 %v666, %v670
    %s673 = sld [smem:[#allocation6 + $0x11]]
    %v674 = vstv %s673
    %v675 = vmul.f32 %v241, %v674
    %v676 = vmul.f32 %v242, %v674
    %v677 = vadd.f32 %v671, %v675
    %v678 = vadd.f32 %v672, %v676
    %s679 = sld [smem:[#allocation6 + $0x18]]
    %v680 = vstv %s679
    %v681 = vmul.f32 %v85, %v680
    %v682 = vmul.f32 %v86, %v680
    %v683 = vmul.f32 %v87, %v680
    %v684 = vmul.f32 %v88, %v680
    %v689 = vsel %vm211, %v683, %v681
    %v690 = vsel %vm211, %v684, %v682
    %v693 = vadd.f32 %v677, %v689
    %v694 = vadd.f32 %v678, %v690
    %s695 = sld [smem:[#allocation6 + $0x1f]]
    %v696 = vstv %s695
    %v697 = vmul.f32 %v250, %v696
    %v698 = vmul.f32 %v251, %v696
    %v699 = vadd.f32 %v693, %v697
    %v700 = vadd.f32 %v694, %v698
    %s701 = sld [smem:[#allocation6 + $0x26]]
    %v702 = vstv %s701
    %v703 = vmul.f32 %v259, %v702
    %v704 = vmul.f32 %v260, %v702
    %v705 = vadd.f32 %v699, %v703
    %v706 = vadd.f32 %v700, %v704
    %s707 = sld [smem:[#allocation6 + $0x2d]]
    %v708 = vstv %s707
    %v709 = vmul.f32 %v268, %v708
    %v710 = vmul.f32 %v269, %v708
    %v711 = vadd.f32 %v705, %v709
    %v712 = vadd.f32 %v706, %v710
    %s713 = sld [smem:[#allocation6 + $0x34]]
    %v714 = vstv %s713
    %v715 = vmul.f32 %v284, %v714
    %v716 = vmul.f32 %v285, %v714
    %v717 = vadd.f32 %v711, %v715
    %v718 = vadd.f32 %v712, %v716
    %s719 = sld [smem:[#allocation6 + $0x3b]]
    %v720 = vstv %s719
    %v721 = vmul.f32 %v292, %v720
    %v722 = vmul.f32 %v293, %v720
    %v723 = vadd.f32 %v717, %v721
    %v724 = vadd.f32 %v718, %v722
    %s725 = sld [smem:[#allocation6 + $0x42]]
    %v726 = vstv %s725
    %v727 = vmul.f32 %v300, %v726
    %v728 = vmul.f32 %v301, %v726
    %v729 = vadd.f32 %v723, %v727
    %v730 = vadd.f32 %v724, %v728
    %s731 = sld [smem:[#allocation6 + $0x49]]
    %v732 = vstv %s731
    %v733 = vmul.f32 %v106, %v732
    %v734 = vmul.f32 %v113, %v732
    %v735 = vmul.f32 %v120, %v732
    %v736 = vmul.f32 %v127, %v732
    %v741 = vsel %vm211, %v735, %v733
    %v742 = vsel %vm211, %v736, %v734
    %v745 = vadd.f32 %v729, %v741
    %v746 = vadd.f32 %v730, %v742
    %s747 = sld [smem:[#allocation6 + $0x50]]
    %v748 = vstv %s747
    %v749 = vmul.f32 %v308, %v748
    %v750 = vmul.f32 %v309, %v748
    %v751 = vadd.f32 %v745, %v749
    %v752 = vadd.f32 %v746, %v750
    %s753 = sld [smem:[#allocation6 + $0x57]]
    %v754 = vstv %s753
    %v755 = vmul.f32 %v316, %v754
    %v756 = vmul.f32 %v317, %v754
    %v757 = vadd.f32 %v751, %v755
    %v758 = vadd.f32 %v752, %v756
    %s759 = sld [smem:[#allocation6 + $0x5e]]
    %v760 = vstv %s759
    %v761 = vmul.f32 %v324, %v760
    %v762 = vmul.f32 %v325, %v760
    %v763 = vadd.f32 %v757, %v761
    %v764 = vadd.f32 %v758, %v762
    %v765 = vadd.f32 %v661, %v763
    %v766 = vadd.f32 %v662, %v764
    %s767 = sld [smem:[#allocation6 + $0x4]]
    %v768 = vstv %s767
    %v769 = vmul.f32 %v223, %v768
    %v770 = vmul.f32 %v224, %v768
    %s771 = sld [smem:[#allocation6 + $0xb]]
    %v772 = vstv %s771
    %v773 = vmul.f32 %v232, %v772
    %v774 = vmul.f32 %v233, %v772
    %v775 = vadd.f32 %v769, %v773
    %v776 = vadd.f32 %v770, %v774
    %s777 = sld [smem:[#allocation6 + $0x12]]
    %v778 = vstv %s777
    %v779 = vmul.f32 %v241, %v778
    %v780 = vmul.f32 %v242, %v778
    %v781 = vadd.f32 %v775, %v779
    %v782 = vadd.f32 %v776, %v780
    %s783 = sld [smem:[#allocation6 + $0x19]]
    %v784 = vstv %s783
    %v785 = vmul.f32 %v85, %v784
    %v786 = vmul.f32 %v86, %v784
    %v787 = vmul.f32 %v87, %v784
    %v788 = vmul.f32 %v88, %v784
    %v793 = vsel %vm211, %v787, %v785
    %v794 = vsel %vm211, %v788, %v786
    %v797 = vadd.f32 %v781, %v793
    %v798 = vadd.f32 %v782, %v794
    %s799 = sld [smem:[#allocation6 + $0x20]]
    %v800 = vstv %s799
    %v801 = vmul.f32 %v250, %v800
    %v802 = vmul.f32 %v251, %v800
    %v803 = vadd.f32 %v797, %v801
    %v804 = vadd.f32 %v798, %v802
    %s805 = sld [smem:[#allocation6 + $0x27]]
    %v806 = vstv %s805
    %v807 = vmul.f32 %v259, %v806
    %v808 = vmul.f32 %v260, %v806
    %v809 = vadd.f32 %v803, %v807
    %v810 = vadd.f32 %v804, %v808
    %s811 = sld [smem:[#allocation6 + $0x2e]]
    %v812 = vstv %s811
    %v813 = vmul.f32 %v268, %v812
    %v814 = vmul.f32 %v269, %v812
    %v815 = vadd.f32 %v809, %v813
    %v816 = vadd.f32 %v810, %v814
    %s817 = sld [smem:[#allocation6 + $0x35]]
    %v818 = vstv %s817
    %v819 = vmul.f32 %v284, %v818
    %v820 = vmul.f32 %v285, %v818
    %v821 = vadd.f32 %v815, %v819
    %v822 = vadd.f32 %v816, %v820
    %s823 = sld [smem:[#allocation6 + $0x3c]]
    %v824 = vstv %s823
    %v825 = vmul.f32 %v292, %v824
    %v826 = vmul.f32 %v293, %v824
    %v827 = vadd.f32 %v821, %v825
    %v828 = vadd.f32 %v822, %v826
    %s829 = sld [smem:[#allocation6 + $0x43]]
    %v830 = vstv %s829
    %v831 = vmul.f32 %v300, %v830
    %v832 = vmul.f32 %v301, %v830
    %v833 = vadd.f32 %v827, %v831
    %v834 = vadd.f32 %v828, %v832
    %s835 = sld [smem:[#allocation6 + $0x4a]]
    %v836 = vstv %s835
    %v837 = vmul.f32 %v106, %v836
    %v838 = vmul.f32 %v113, %v836
    %v839 = vmul.f32 %v120, %v836
    %v840 = vmul.f32 %v127, %v836
    %v845 = vsel %vm211, %v839, %v837
    %v846 = vsel %vm211, %v840, %v838
    %v849 = vadd.f32 %v833, %v845
    %v850 = vadd.f32 %v834, %v846
    %s851 = sld [smem:[#allocation6 + $0x51]]
    %v852 = vstv %s851
    %v853 = vmul.f32 %v308, %v852
    %v854 = vmul.f32 %v309, %v852
    %v855 = vadd.f32 %v849, %v853
    %v856 = vadd.f32 %v850, %v854
    %s857 = sld [smem:[#allocation6 + $0x58]]
    %v858 = vstv %s857
    %v859 = vmul.f32 %v316, %v858
    %v860 = vmul.f32 %v317, %v858
    %v861 = vadd.f32 %v855, %v859
    %v862 = vadd.f32 %v856, %v860
    %s863 = sld [smem:[#allocation6 + $0x5f]]
    %v864 = vstv %s863
    %v865 = vmul.f32 %v324, %v864
    %v866 = vmul.f32 %v325, %v864
    %v867 = vadd.f32 %v861, %v865
    %v868 = vadd.f32 %v862, %v866
    %869 = vrot.lane.b32.xlu0 %v867, 127
    %v870 = vpop.permute.xlu0 %869
    %871 = vrot.lane.b32.xlu0 %v868, 127
    %v872 = vpop.permute.xlu0 %871
    %vm873 = vcmp.lt.s32.totalorder %v129, 127
    %v874 = vsel %vm873, %v870, %v872
    %v875 = vsel %vm873, %v872, %v870
    %v876 = vmul.f32 %v874, %v193
    %v877 = vmul.f32 %v875, %v194
    %v878 = vadd.f32 %v765, %v876
    %v879 = vadd.f32 %v766, %v877
    %s880 = sld [smem:[#allocation6 + $0x5]]
    %v881 = vstv %s880
    %v882 = vmul.f32 %v223, %v881
    %v883 = vmul.f32 %v224, %v881
    %s884 = sld [smem:[#allocation6 + $0xc]]
    %v885 = vstv %s884
    %v886 = vmul.f32 %v232, %v885
    %v887 = vmul.f32 %v233, %v885
    %v888 = vadd.f32 %v882, %v886
    %v889 = vadd.f32 %v883, %v887
    %s890 = sld [smem:[#allocation6 + $0x13]]
    %v891 = vstv %s890
    %v892 = vmul.f32 %v241, %v891
    %v893 = vmul.f32 %v242, %v891
    %v894 = vadd.f32 %v888, %v892
    %v895 = vadd.f32 %v889, %v893
    %s896 = sld [smem:[#allocation6 + $0x1a]]
    %v897 = vstv %s896
    %v898 = vmul.f32 %v85, %v897
    %v899 = vmul.f32 %v86, %v897
    %v900 = vmul.f32 %v87, %v897
    %v901 = vmul.f32 %v88, %v897
    %v906 = vsel %vm211, %v900, %v898
    %v907 = vsel %vm211, %v901, %v899
    %v910 = vadd.f32 %v894, %v906
    %v911 = vadd.f32 %v895, %v907
    %s912 = sld [smem:[#allocation6 + $0x21]]
    %v913 = vstv %s912
    %v914 = vmul.f32 %v250, %v913
    %v915 = vmul.f32 %v251, %v913
    %v916 = vadd.f32 %v910, %v914
    %v917 = vadd.f32 %v911, %v915
    %s918 = sld [smem:[#allocation6 + $0x28]]
    %v919 = vstv %s918
    %v920 = vmul.f32 %v259, %v919
    %v921 = vmul.f32 %v260, %v919
    %v922 = vadd.f32 %v916, %v920
    %v923 = vadd.f32 %v917, %v921
    %s924 = sld [smem:[#allocation6 + $0x2f]]
    %v925 = vstv %s924
    %v926 = vmul.f32 %v268, %v925
    %v927 = vmul.f32 %v269, %v925
    %v928 = vadd.f32 %v922, %v926
    %v929 = vadd.f32 %v923, %v927
    %s930 = sld [smem:[#allocation6 + $0x36]]
    %v931 = vstv %s930
    %v932 = vmul.f32 %v284, %v931
    %v933 = vmul.f32 %v285, %v931
    %v934 = vadd.f32 %v928, %v932
    %v935 = vadd.f32 %v929, %v933
    %s936 = sld [smem:[#allocation6 + $0x3d]]
    %v937 = vstv %s936
    %v938 = vmul.f32 %v292, %v937
    %v939 = vmul.f32 %v293, %v937
    %v940 = vadd.f32 %v934, %v938
    %v941 = vadd.f32 %v935, %v939
    %s942 = sld [smem:[#allocation6 + $0x44]]
    %v943 = vstv %s942
    %v944 = vmul.f32 %v300, %v943
    %v945 = vmul.f32 %v301, %v943
    %v946 = vadd.f32 %v940, %v944
    %v947 = vadd.f32 %v941, %v945
    %s948 = sld [smem:[#allocation6 + $0x4b]]
    %v949 = vstv %s948
    %v950 = vmul.f32 %v106, %v949
    %v951 = vmul.f32 %v113, %v949
    %v952 = vmul.f32 %v120, %v949
    %v953 = vmul.f32 %v127, %v949
    %v958 = vsel %vm211, %v952, %v950
    %v959 = vsel %vm211, %v953, %v951
    %v962 = vadd.f32 %v946, %v958
    %v963 = vadd.f32 %v947, %v959
    %s964 = sld [smem:[#allocation6 + $0x52]]
    %v965 = vstv %s964
    %v966 = vmul.f32 %v308, %v965
    %v967 = vmul.f32 %v309, %v965
    %v968 = vadd.f32 %v962, %v966
    %v969 = vadd.f32 %v963, %v967
    %s970 = sld [smem:[#allocation6 + $0x59]]
    %v971 = vstv %s970
    %v972 = vmul.f32 %v316, %v971
    %v973 = vmul.f32 %v317, %v971
    %v974 = vadd.f32 %v968, %v972
    %v975 = vadd.f32 %v969, %v973
    %s976 = sld [smem:[#allocation6 + $0x60]]
    %v977 = vstv %s976
    %v978 = vmul.f32 %v324, %v977
    %v979 = vmul.f32 %v325, %v977
    %v980 = vadd.f32 %v974, %v978
    %v981 = vadd.f32 %v975, %v979
    %982 = vrot.lane.b32.xlu0 %v980, 126
    %v983 = vpop.permute.xlu0 %982
    %984 = vrot.lane.b32.xlu0 %v981, 126
    %v985 = vpop.permute.xlu0 %984
    %vm986 = vcmp.lt.s32.totalorder %v129, 126
    %v987 = vsel %vm986, %v983, %v985
    %v988 = vsel %vm986, %v985, %v983
    %v989 = vmul.f32 %v987, %v199
    %v990 = vmul.f32 %v988, %v200
    %v991 = vadd.f32 %v878, %v989
    %v992 = vadd.f32 %v879, %v990
    %s993 = sld [smem:[#allocation6 + $0x6]]
    %v994 = vstv %s993
    %v995 = vmul.f32 %v223, %v994
    %v996 = vmul.f32 %v224, %v994
    %s997 = sld [smem:[#allocation6 + $0xd]]
    %v998 = vstv %s997
    %v999 = vmul.f32 %v232, %v998
    %v1000 = vmul.f32 %v233, %v998
    %v1001 = vadd.f32 %v995, %v999
    %v1002 = vadd.f32 %v996, %v1000
    %s1003 = sld [smem:[#allocation6 + $0x14]]
    %v1004 = vstv %s1003
    %v1005 = vmul.f32 %v241, %v1004
    %v1006 = vmul.f32 %v242, %v1004
    %v1007 = vadd.f32 %v1001, %v1005
    %v1008 = vadd.f32 %v1002, %v1006
    %s1009 = sld [smem:[#allocation6 + $0x1b]]
    %v1010 = vstv %s1009
    %v1011 = vmul.f32 %v85, %v1010
    %v1012 = vmul.f32 %v86, %v1010
    %v1013 = vmul.f32 %v87, %v1010
    %v1014 = vmul.f32 %v88, %v1010
    %v1019 = vsel %vm211, %v1013, %v1011
    %v1020 = vsel %vm211, %v1014, %v1012
    %v1023 = vadd.f32 %v1007, %v1019
    %v1024 = vadd.f32 %v1008, %v1020
    %s1025 = sld [smem:[#allocation6 + $0x22]]
    %v1026 = vstv %s1025
    %v1027 = vmul.f32 %v250, %v1026
    %v1028 = vmul.f32 %v251, %v1026
    %v1029 = vadd.f32 %v1023, %v1027
    %v1030 = vadd.f32 %v1024, %v1028
    %s1031 = sld [smem:[#allocation6 + $0x29]]
    %v1032 = vstv %s1031
    %v1033 = vmul.f32 %v259, %v1032
    %v1034 = vmul.f32 %v260, %v1032
    %v1035 = vadd.f32 %v1029, %v1033
    %v1036 = vadd.f32 %v1030, %v1034
    %s1037 = sld [smem:[#allocation6 + $0x30]]
    %v1038 = vstv %s1037
    %v1039 = vmul.f32 %v268, %v1038
    %v1040 = vmul.f32 %v269, %v1038
    %v1041 = vadd.f32 %v1035, %v1039
    %v1042 = vadd.f32 %v1036, %v1040
    %s1043 = sld [smem:[#allocation6 + $0x37]]
    %v1044 = vstv %s1043
    %v1045 = vmul.f32 %v284, %v1044
    %v1046 = vmul.f32 %v285, %v1044
    %v1047 = vadd.f32 %v1041, %v1045
    %v1048 = vadd.f32 %v1042, %v1046
    %s1049 = sld [smem:[#allocation6 + $0x3e]]
    %v1050 = vstv %s1049
    %v1051 = vmul.f32 %v292, %v1050
    %v1052 = vmul.f32 %v293, %v1050
    %v1053 = vadd.f32 %v1047, %v1051
    %v1054 = vadd.f32 %v1048, %v1052
    %s1055 = sld [smem:[#allocation6 + $0x45]]
    %v1056 = vstv %s1055
    %v1057 = vmul.f32 %v300, %v1056
    %v1058 = vmul.f32 %v301, %v1056
    %v1059 = vadd.f32 %v1053, %v1057
    %v1060 = vadd.f32 %v1054, %v1058
    %s1061 = sld [smem:[#allocation6 + $0x4c]]
    %v1062 = vstv %s1061
    %v1063 = vmul.f32 %v106, %v1062
    %v1064 = vmul.f32 %v113, %v1062
    %v1065 = vmul.f32 %v120, %v1062
    %v1066 = vmul.f32 %v127, %v1062
    %v1071 = vsel %vm211, %v1065, %v1063
    %v1072 = vsel %vm211, %v1066, %v1064
    %v1075 = vadd.f32 %v1059, %v1071
    %v1076 = vadd.f32 %v1060, %v1072
    %s1077 = sld [smem:[#allocation6 + $0x53]]
    %v1078 = vstv %s1077
    %v1079 = vmul.f32 %v308, %v1078
    %v1080 = vmul.f32 %v309, %v1078
    %v1081 = vadd.f32 %v1075, %v1079
    %v1082 = vadd.f32 %v1076, %v1080
    %s1083 = sld [smem:[#allocation6 + $0x5a]]
    %v1084 = vstv %s1083
    %v1085 = vmul.f32 %v316, %v1084
    %v1086 = vmul.f32 %v317, %v1084
    %v1087 = vadd.f32 %v1081, %v1085
    %v1088 = vadd.f32 %v1082, %v1086
    %s1089 = sld [smem:[#allocation6 + $0x61]]
    %v1090 = vstv %s1089
    %v1091 = vmul.f32 %v324, %v1090
    %v1092 = vmul.f32 %v325, %v1090
    %v1093 = vadd.f32 %v1087, %v1091
    %v1094 = vadd.f32 %v1088, %v1092
    %1095 = vrot.lane.b32.xlu0 %v1093, 125
    %v1096 = vpop.permute.xlu0 %1095
    %1097 = vrot.lane.b32.xlu0 %v1094, 125
    %v1098 = vpop.permute.xlu0 %1097
    %vm1099 = vcmp.lt.s32.totalorder %v129, 125
    %v1100 = vsel %vm1099, %v1096, %v1098
    %v1101 = vsel %vm1099, %v1098, %v1096
    %v1102 = vmul.f32 %v1100, %v205
    %v1103 = vmul.f32 %v1101, %v206
    %v1104 = vadd.f32 %v991, %v1102
    %v1105 = vadd.f32 %v992, %v1103
    %v1106 = vxor.u32 %v1104, 2147483648
    %v1107 = vxor.u32 %v1105, 2147483648
    %v1108 = vmul.f32 %v1106, 1.442695
    %v1109 = vpow.pop %v1108
    %v1110 = vmul.f32 %v1107, 1.442695
    %v1111 = vpow.pop %v1110
    %v1112 = vadd.f32 %v1109, 1.0
    %v1113 = vadd.f32 %v1111, 1.0
    %v1114 = vrcp.pop %v1112
    %v1115 = vmul.f32 %v1112, %v1114
    %v1116 = vsub.f32 1.0, %v1115
    %v1117 = vmul.f32 %v1114, %v1116
    %v1118 = vadd.f32 %v1114, %v1117
    %vm1119 = vweird.f32 %v1112
    %vm1120 = vweird.f32 %v1114
    %vm1121 = vmor %vm1119, %vm1120
    %v1122 = vsel %vm1121, %v1114, %v1118
    %v1123 = vand.u32 2147483647, %v1112
    %vm1124 = vcmp.eq.f32.partialorder %v1123, 8.507059e+37
    %v1125 = vand.u32 %v1112, 2147483648
    %v1126 = vor.u32 1.1754944e-38, %v1125
    %v1127 = vsel %vm1124, %v1126, %v1122
    %v1128 = vmul.f32 1.0, %v1127
    %v1129 = vrcp.pop %v1113
    %v1130 = vmul.f32 %v1113, %v1129
    %v1131 = vsub.f32 1.0, %v1130
    %v1132 = vmul.f32 %v1129, %v1131
    %v1133 = vadd.f32 %v1129, %v1132
    %vm1134 = vweird.f32 %v1113
    %vm1135 = vweird.f32 %v1129
    %vm1136 = vmor %vm1134, %vm1135
    %v1137 = vsel %vm1136, %v1129, %v1133
    %v1138 = vand.u32 2147483647, %v1113
    %vm1139 = vcmp.eq.f32.partialorder %v1138, 8.507059e+37
    %v1140 = vand.u32 %v1113, 2147483648
    %v1141 = vor.u32 1.1754944e-38, %v1140
    %v1142 = vsel %vm1139, %v1141, %v1137
    %v1143 = vmul.f32 1.0, %v1142
    %v1146 = vrot.slane %v1143, 6
    %vm1147 = vcmask 1041408
    %v1148 = vsel %vm1147, %v1128, %v1146
    %1150 = vst [vmem:[#allocation7] sm:$0xf] %v1148
    // Predicated region
    $region18: #{tpu_custom_call.1} parent=1 // pred_check
      _
    $region19: #{tpu_custom_call.1} parent=1 // pred_check_branch
      %1152 = sbr.rel (0) target = $region21
    $region20: #{tpu_custom_call.1} parent=1 // pred_region
      %1154 = vsyncadd [#allocation4], 0
      %s1156 = sshll.u32 [#allocation7], 4
      %s1157 = int_to_ptr.vmem [resolvable:$true] %s1156
      %s1158 = sshll.u32 %s2, 4
      %s1159 = int_to_ptr.hbm [resolvable:$true] %s1158
      %1161 = dma.vmem_to_hbm [thread:$0]  %s1157, 64, %s1159, [#allocation4]
    $region21: #{tpu_custom_call.1} parent=1 // pred_fallthru
      _
    // Predicated region
    $region22: #{tpu_custom_call.1} parent=1 // pred_check
      _
    $region23: #{tpu_custom_call.1} parent=1 // pred_check_branch
      %1163 = sbr.rel (0) target = $region25
    $region24: #{tpu_custom_call.1} parent=1 // pred_region
      %1165 = dma.done [#allocation4], 64
    $region25: #{tpu_custom_call.1} parent=1 // pred_fallthru
      _
    %1166 = vsyncpa [#allocation3], 1
    %1167 = vsyncpa [#allocation4], 1
    %1168 = vsyncpa [#allocation5], 1

</llo_original>
